<compile_context>
chip_gen: v7x
topology: tpu7x:2x2x1
jax: 0.10.0
libtpu: 0.0.40
codegen_flags: <defaults>
</compile_context>

<pallas_src>
import functools
import math

import numpy as np

import jax
import jax.numpy as jnp
from jax.experimental import pallas as pl
from jax.experimental.pallas import tpu as pltpu


PRIOR_SIGMA = 1.0
LANE = 128
N_LAYERS = 3


def _round_up(n, m):
    return ((n + m - 1) // m) * m


# ---------------------------------------------------------------------------
# Kernel
# ---------------------------------------------------------------------------
def _bnn_fused_kernel(x_ref, params_ref, out_ref, kl_ref, wsample_ref, *,
                      prior_sigma, k_p):
    """Fused 3-layer Bayesian MLP forward.

    x_ref:       (TB, FEAT_P)                      VMEM, one batch tile
    params_ref:  (3, 3, FEAT_P+8, FEAT_P)          VMEM, resident (mu/rho/eps)
                 rows [0:FEAT_P] = transposed weight, row FEAT_P = bias,
                 rows FEAT_P+1.. = zero-KL padding.
    out_ref:     (TB, FEAT_P)                      VMEM, lane-dense output tile
    kl_ref:      (1,)                              SMEM, total KL scalar
    wsample_ref: (3, FEAT_P+8, FEAT_P)             VMEM scratch, sampled params
    """
    log_prior = math.log(prior_sigma)
    prior_sq = prior_sigma * prior_sigma

    # Sample weights/biases + accumulate KL once (first grid step only); the
    # sampled values are cached in VMEM scratch and reused by all batch tiles.
    @pl.when(pl.program_id(0) == 0)
    def _sample_all():
        kl_total = jnp.float32(0.0)
        for l in range(N_LAYERS):
            mu = params_ref[l, 0]
            rho = params_ref[l, 1]
            eps = params_ref[l, 2]
            sigma = jax.nn.softplus(rho)
            sample = mu + sigma * eps
            # One pass covers weight + bias (+ zero-KL padding) of this layer.
            inv_two_var = 0.5 * pl.reciprocal(sigma * sigma, approx=False)
            kl_total = kl_total + jnp.sum(
                jnp.log(sigma) - log_prior
                + (prior_sq + sample * sample) * inv_two_var - 0.5)
            wsample_ref[l] = sample
        kl_ref[0] = kl_total

    # Forward: activations stay resident in vregs/VMEM, never touch HBM.
    h = x_ref[...]
    for l in range(N_LAYERS):
        w = wsample_ref[l, :k_p, :]              # (FEAT_P, FEAT_P), already (in, out)
        b = wsample_ref[l, k_p:k_p + 1, :]       # (1, FEAT_P) bias row
        h = jnp.dot(h, w, preferred_element_type=jnp.float32) + b
        if l < N_LAYERS - 1:
            h = jnp.maximum(h, 0.0)
    out_ref[...] = h.astype(out_ref.dtype)


def _bnn_fused_call(x_p, params_slab, *, tb, prior_sigma=PRIOR_SIGMA):
    """Single fused pallas_call for the whole padded 3-layer BNN forward."""
    b_p, feat_p = x_p.shape
    _, _, feat_pb, _ = params_slab.shape        # feat_p + 8

    kernel = functools.partial(_bnn_fused_kernel, prior_sigma=prior_sigma,
                               k_p=feat_p)
    out, kl = pl.pallas_call(
        kernel,
        out_shape=(
            jax.ShapeDtypeStruct((b_p, feat_p), jnp.float32),
            jax.ShapeDtypeStruct((1,), jnp.float32),
        ),
        grid_spec=pltpu.PrefetchScalarGridSpec(
            num_scalar_prefetch=0,
            grid=(b_p // tb,),
            in_specs=[
                # x: blocked over batch.
                pl.BlockSpec((tb, feat_p), lambda i: (i, 0)),
                # Parameter slab: one resident full-array block (single DMA).
                pl.BlockSpec((N_LAYERS, 3, feat_pb, feat_p),
                             lambda i: (0, 0, 0, 0)),
            ],
            out_specs=(
                pl.BlockSpec((tb, feat_p), lambda i: (i, 0)),
                # KL scalar lives in SMEM.
                pl.BlockSpec(memory_space=pltpu.MemorySpace.SMEM),
            ),
            scratch_shapes=[
                pltpu.VMEM((N_LAYERS, feat_pb, feat_p), jnp.float32),
            ],
        ),
        # "arbitrary": sampled weights are cached in scratch at step 0 and
        # reused by later batch tiles, so the batch axis must not be split
        # across TensorCores.  (At batch=8 there is only one grid step.)
        compiler_params=pltpu.CompilerParams(
            dimension_semantics=("arbitrary",)),
    )(x_p, params_slab)
    return out, kl[0]


# ---------------------------------------------------------------------------
# Parameter init / packing
# ---------------------------------------------------------------------------
def init_bayesian_linear_params(in_features, out_features):
    """Deterministic init matching BayesianLinear.__init__.

    The weight is stored pre-transposed as (in_features, out_features) so the
    kernel matmul is a direct MXU (m,k)x(k,n) contraction.  KL is a sum of
    elementwise terms, so the transpose does not change its value.
    """
    return dict(
        weight_mu_t=jnp.zeros((in_features, out_features), jnp.float32),
        weight_rho_t=jnp.full((in_features, out_features), -5.0, jnp.float32),
        bias_mu=jnp.zeros((out_features,), jnp.float32),
        bias_rho=jnp.full((out_features,), -5.0, jnp.float32),
    )


def _draw_eps(params, key):
    """Same noise stream for the kernel path and the pure-JAX reference."""
    eps = []
    for p in params:
        key, kw, kb = jax.random.split(key, 3)
        eps.append((
            jax.random.normal(kw, p["weight_mu_t"].shape, jnp.float32),
            jax.random.normal(kb, p["bias_mu"].shape, jnp.float32),
        ))
    return eps


def _pack_layer(p, eps_w, eps_b, feat_p, rho_pad):
    """Pack one layer into a (3, feat_p+8, feat_p) slab: mu / rho / eps planes,
    weight on rows [0:feat_p], bias on row feat_p, zero-KL padding elsewhere."""
    def pad2(a, rows, cols, val):
        return jnp.pad(a, ((0, rows - a.shape[0]), (0, cols - a.shape[1])),
                       constant_values=val)

    wm = pad2(p["weight_mu_t"], feat_p, feat_p, 0.0)
    wr = pad2(p["weight_rho_t"], feat_p, feat_p, rho_pad)
    we = pad2(eps_w, feat_p, feat_p, 0.0)
    bm = pad2(p["bias_mu"][None, :], 8, feat_p, 0.0)
    br = pad2(p["bias_rho"][None, :], 8, feat_p, rho_pad)
    be = pad2(eps_b[None, :], 8, feat_p, 0.0)
    return jnp.stack([jnp.concatenate([wm, bm], axis=0),
                      jnp.concatenate([wr, br], axis=0),
                      jnp.concatenate([we, be], axis=0)], axis=0)


# ---------------------------------------------------------------------------
# Public forward (one jitted executable: RNG + packing + fused kernel + slice)
# ---------------------------------------------------------------------------
@jax.jit
def bnn_regressor_forward(params, x, key):
    """Forward of BNNRegressor: returns (mu, log_sigma, kl_sum)."""
    assert len(params) == N_LAYERS
    batch, in_dim = x.shape
    dims = [in_dim] + [p["weight_mu_t"].shape[1] for p in params]
    final_out = dims[-1]

    # Shared lane-dense feature width (padded); padding is exact-zero-KL.
    feat_p = _round_up(max(dims), LANE)
    if batch >= LANE:
        b_p, tb = _round_up(batch, LANE), LANE
    else:
        b_p = _round_up(batch, 8)
        tb = b_p
    # softplus(rho_pad) == prior_sigma  =>  per-element KL of padding == 0.
    rho_pad = math.log(math.expm1(PRIOR_SIGMA))

    eps = _draw_eps(params, key)
    params_slab = jnp.stack(
        [_pack_layer(p, ew, eb, feat_p, rho_pad)
         for p, (ew, eb) in zip(params, eps)], axis=0)     # (3,3,feat_p+8,feat_p)
    x_p = jnp.pad(x, ((0, b_p - batch), (0, feat_p - in_dim)))

    out_p, kl_sum = _bnn_fused_call(x_p, params_slab, tb=tb)

    out = out_p[:batch, :final_out]
    out_dim = final_out // 2
    return out[:, :out_dim], out[:, out_dim:], kl_sum


# ---------------------------------------------------------------------------
# Pure-JAX reference (same eps stream) for correctness checking
# ---------------------------------------------------------------------------
def _reference_forward(params, x, key, prior_sigma=PRIOR_SIGMA):
    eps = _draw_eps(params, key)
    log_prior = math.log(prior_sigma)
    kl_sum = jnp.float32(0.0)
    h = x
    for l, (p, (ew, eb)) in enumerate(zip(params, eps)):
        w_sig = jax.nn.softplus(p["weight_rho_t"])
        b_sig = jax.nn.softplus(p["bias_rho"])
        w = p["weight_mu_t"] + w_sig * ew
        b = p["bias_mu"] + b_sig * eb
        for s, sig in ((w, w_sig), (b, b_sig)):
            kl_sum = kl_sum + jnp.sum(
                jnp.log(sig) - log_prior
                + (prior_sigma ** 2 + s * s) / (2.0 * sig * sig) - 0.5)
        h = jnp.dot(h, w, precision=jax.lax.Precision.HIGHEST) + b
        if l < N_LAYERS - 1:
            h = jnp.maximum(h, 0.0)
    out_dim = params[-1]["bias_mu"].shape[0] // 2
    return h[:, :out_dim], h[:, out_dim:], kl_sum


if __name__ == "__main__":
    # Small shapes consistent with BNNRegressor(in_dim, hidden_dim, out_dim).
    batch, in_dim, hidden_dim, out_dim = 8, 10, 32, 2

    params = [
        init_bayesian_linear_params(in_dim, hidden_dim),        # b1
        init_bayesian_linear_params(hidden_dim, hidden_dim),    # b2
        init_bayesian_linear_params(hidden_dim, 2 * out_dim),   # b3
    ]

    key = jax.random.PRNGKey(0)
    key, kx, keps = jax.random.split(key, 3)
    x = jax.random.normal(kx, (batch, in_dim), jnp.float32)

    mu, log_sigma, kl_sum = bnn_regressor_forward(params, x, keps)
    jax.block_until_ready((mu, log_sigma, kl_sum))

    assert mu.shape == (batch, out_dim)
    assert log_sigma.shape == (batch, out_dim)
    assert kl_sum.shape == ()

    # Correctness check against a pure-JAX reference using the same eps stream.
    mu_r, ls_r, kl_r = _reference_forward(params, x, keps)
    np.testing.assert_allclose(np.asarray(mu), np.asarray(mu_r),
                               rtol=1e-2, atol=1e-6)
    np.testing.assert_allclose(np.asarray(log_sigma), np.asarray(ls_r),
                               rtol=1e-2, atol=1e-6)
    np.testing.assert_allclose(float(kl_sum), float(kl_r), rtol=1e-4)

    print("KERNEL_OK")
</pallas_src>

<mosaic_0001>
module attributes {stable_mosaic.version = 11 : i64} {
  func.func @_bnn_fused_kernel(%arg0: i32, %arg1: memref<8x128xf32, #tpu.memory_space<vmem>>, %arg2: memref<3x3x136x128xf32, #tpu.memory_space<vmem>>, %arg3: memref<8x128xf32, #tpu.memory_space<vmem>>, %arg4: memref<1xf32, #tpu.memory_space<smem>>, %arg5: memref<3x136x128xf32, #tpu.memory_space<vmem>>) attributes {dimension_semantics = [#tpu.dimension_semantics<arbitrary>], iteration_bounds = array<i64: 1>, scalar_prefetch = 0 : i64, scratch_operands = 1 : i64, tpu.core_type = #tpu.core_type<tc>, window_params = [{transform_indices = @transform_0, window_bounds = array<i64: 8, 128>}, {pipeline_mode = #tpu.pipeline_mode<synchronous>, transform_indices = @transform_1, window_bounds = array<i64: 3, 3, 136, 128>}, {transform_indices = @transform_2, window_bounds = array<i64: 8, 128>}, {transform_indices = @transform_3, window_bounds = array<i64: 1>}]} {
    %c0_i32 = arith.constant 0 : i32
    %0 = arith.cmpi eq, %arg0, %c0_i32 : i32
    %1 = arith.extui %0 : i1 to i32
    %c0_i32_0 = arith.constant 0 : i32
    %2 = arith.cmpi ne, %1, %c0_i32_0 : i32
    scf.if %2 {
      %c0_23 = arith.constant 0 : index
      %c0_24 = arith.constant 0 : index
      %c0_25 = arith.constant 0 : index
      %c0_26 = arith.constant 0 : index
      %30 = vector.load %arg2[%c0_23, %c0_24, %c0_25, %c0_26] : memref<3x3x136x128xf32, #tpu.memory_space<vmem>>, vector<1x1x136x128xf32>
      %31 = vector.shape_cast %30 : vector<1x1x136x128xf32> to vector<136x128xf32>
      %c0_27 = arith.constant 0 : index
      %c1_28 = arith.constant 1 : index
      %c0_29 = arith.constant 0 : index
      %c0_30 = arith.constant 0 : index
      %32 = vector.load %arg2[%c0_27, %c1_28, %c0_29, %c0_30] : memref<3x3x136x128xf32, #tpu.memory_space<vmem>>, vector<1x1x136x128xf32>
      %33 = vector.shape_cast %32 : vector<1x1x136x128xf32> to vector<136x128xf32>
      %c0_31 = arith.constant 0 : index
      %c2_32 = arith.constant 2 : index
      %c0_33 = arith.constant 0 : index
      %c0_34 = arith.constant 0 : index
      %34 = vector.load %arg2[%c0_31, %c2_32, %c0_33, %c0_34] : memref<3x3x136x128xf32, #tpu.memory_space<vmem>>, vector<1x1x136x128xf32>
      %35 = vector.shape_cast %34 : vector<1x1x136x128xf32> to vector<136x128xf32>
      %cst_35 = arith.constant 0.000000e+00 : f32
      %36 = vector.broadcast %cst_35 : f32 to vector<136x128xf32>
      %37 = arith.maximumf %33, %36 : vector<136x128xf32>
      %38 = vector.broadcast %cst_35 : f32 to vector<136x128xf32>
      %39 = arith.subf %33, %38 : vector<136x128xf32>
      %40 = arith.cmpf one, %39, %39 : vector<136x128xf32>
      %41 = vector.broadcast %cst_35 : f32 to vector<136x128xf32>
      %42 = arith.addf %33, %41 : vector<136x128xf32>
      %43 = math.absf %39 : vector<136x128xf32>
      %cst_36 = arith.constant 0.000000e+00 : f32
      %44 = vector.broadcast %cst_36 : f32 to vector<136x128xf32>
      %45 = arith.subf %44, %43 : vector<136x128xf32>
      %46 = math.exp %45 : vector<136x128xf32>
      %47 = math.log1p %46 : vector<136x128xf32>
      %48 = arith.addf %37, %47 : vector<136x128xf32>
      %49 = arith.select %40, %42, %48 : vector<136x128xi1>, vector<136x128xf32>
      %50 = arith.mulf %49, %35 : vector<136x128xf32>
      %51 = arith.addf %31, %50 : vector<136x128xf32>
      %52 = arith.mulf %49, %49 : vector<136x128xf32>
      %53 = tpu.reciprocal %52 : vector<136x128xf32> -> vector<136x128xf32>
      %cst_37 = arith.constant 5.000000e-01 : f32
      %54 = vector.broadcast %cst_37 : f32 to vector<136x128xf32>
      %55 = arith.mulf %54, %53 : vector<136x128xf32>
      %56 = math.log %49 : vector<136x128xf32>
      %cst_38 = arith.constant 0.000000e+00 : f32
      %57 = vector.broadcast %cst_38 : f32 to vector<136x128xf32>
      %58 = arith.subf %56, %57 : vector<136x128xf32>
      %59 = arith.mulf %51, %51 : vector<136x128xf32>
      %cst_39 = arith.constant 1.000000e+00 : f32
      %60 = vector.broadcast %cst_39 : f32 to vector<136x128xf32>
      %61 = arith.addf %60, %59 : vector<136x128xf32>
      %62 = arith.mulf %61, %55 : vector<136x128xf32>
      %63 = arith.addf %58, %62 : vector<136x128xf32>
      %cst_40 = arith.constant 5.000000e-01 : f32
      %64 = vector.broadcast %cst_40 : f32 to vector<136x128xf32>
      %65 = arith.subf %63, %64 : vector<136x128xf32>
      %66 = vector.shape_cast %65 : vector<136x128xf32> to vector<1x136x128xf32>
      %cst_41 = arith.constant dense<0.000000e+00> : vector<1xf32>
      %67 = vector.multi_reduction <add>, %66, %cst_41 [1, 2] : vector<1x136x128xf32> to vector<1xf32>
      %68 = vector.shape_cast %67 : vector<1xf32> to vector<1x1x1xf32>
      %69 = vector.extract %68[0, 0, 0] : f32 from vector<1x1x1xf32>
      %cst_42 = arith.constant 0.000000e+00 : f32
      %70 = arith.addf %cst_42, %69 : f32
      %c0_43 = arith.constant 0 : index
      %c0_44 = arith.constant 0 : index
      %c0_45 = arith.constant 0 : index
      %71 = vector.load %arg5[%c0_43, %c0_44, %c0_45] : memref<3x136x128xf32, #tpu.memory_space<vmem>>, vector<1x136x128xf32>
      %72 = vector.shape_cast %71 : vector<1x136x128xf32> to vector<136x128xf32>
      %73 = vector.shape_cast %51 : vector<136x128xf32> to vector<1x136x128xf32>
      tpu.vector_store %arg5[%c0_43, %c0_44, %c0_45], %73 {strides = array<i32>} : memref<3x136x128xf32, #tpu.memory_space<vmem>>, vector<1x136x128xf32>,
      %c1_46 = arith.constant 1 : index
      %c0_47 = arith.constant 0 : index
      %c0_48 = arith.constant 0 : index
      %c0_49 = arith.constant 0 : index
      %74 = vector.load %arg2[%c1_46, %c0_47, %c0_48, %c0_49] : memref<3x3x136x128xf32, #tpu.memory_space<vmem>>, vector<1x1x136x128xf32>
      %75 = vector.shape_cast %74 : vector<1x1x136x128xf32> to vector<136x128xf32>
      %c1_50 = arith.constant 1 : index
      %c1_51 = arith.constant 1 : index
      %c0_52 = arith.constant 0 : index
      %c0_53 = arith.constant 0 : index
      %76 = vector.load %arg2[%c1_50, %c1_51, %c0_52, %c0_53] : memref<3x3x136x128xf32, #tpu.memory_space<vmem>>, vector<1x1x136x128xf32>
      %77 = vector.shape_cast %76 : vector<1x1x136x128xf32> to vector<136x128xf32>
      %c1_54 = arith.constant 1 : index
      %c2_55 = arith.constant 2 : index
      %c0_56 = arith.constant 0 : index
      %c0_57 = arith.constant 0 : index
      %78 = vector.load %arg2[%c1_54, %c2_55, %c0_56, %c0_57] : memref<3x3x136x128xf32, #tpu.memory_space<vmem>>, vector<1x1x136x128xf32>
      %79 = vector.shape_cast %78 : vector<1x1x136x128xf32> to vector<136x128xf32>
      %cst_58 = arith.constant 0.000000e+00 : f32
      %80 = vector.broadcast %cst_58 : f32 to vector<136x128xf32>
      %81 = arith.maximumf %77, %80 : vector<136x128xf32>
      %82 = vector.broadcast %cst_58 : f32 to vector<136x128xf32>
      %83 = arith.subf %77, %82 : vector<136x128xf32>
      %84 = arith.cmpf one, %83, %83 : vector<136x128xf32>
      %85 = vector.broadcast %cst_58 : f32 to vector<136x128xf32>
      %86 = arith.addf %77, %85 : vector<136x128xf32>
      %87 = math.absf %83 : vector<136x128xf32>
      %cst_59 = arith.constant 0.000000e+00 : f32
      %88 = vector.broadcast %cst_59 : f32 to vector<136x128xf32>
      %89 = arith.subf %88, %87 : vector<136x128xf32>
      %90 = math.exp %89 : vector<136x128xf32>
      %91 = math.log1p %90 : vector<136x128xf32>
      %92 = arith.addf %81, %91 : vector<136x128xf32>
      %93 = arith.select %84, %86, %92 : vector<136x128xi1>, vector<136x128xf32>
      %94 = arith.mulf %93, %79 : vector<136x128xf32>
      %95 = arith.addf %75, %94 : vector<136x128xf32>
      %96 = arith.mulf %93, %93 : vector<136x128xf32>
      %97 = tpu.reciprocal %96 : vector<136x128xf32> -> vector<136x128xf32>
      %cst_60 = arith.constant 5.000000e-01 : f32
      %98 = vector.broadcast %cst_60 : f32 to vector<136x128xf32>
      %99 = arith.mulf %98, %97 : vector<136x128xf32>
      %100 = math.log %93 : vector<136x128xf32>
      %cst_61 = arith.constant 0.000000e+00 : f32
      %101 = vector.broadcast %cst_61 : f32 to vector<136x128xf32>
      %102 = arith.subf %100, %101 : vector<136x128xf32>
      %103 = arith.mulf %95, %95 : vector<136x128xf32>
      %cst_62 = arith.constant 1.000000e+00 : f32
      %104 = vector.broadcast %cst_62 : f32 to vector<136x128xf32>
      %105 = arith.addf %104, %103 : vector<136x128xf32>
      %106 = arith.mulf %105, %99 : vector<136x128xf32>
      %107 = arith.addf %102, %106 : vector<136x128xf32>
      %cst_63 = arith.constant 5.000000e-01 : f32
      %108 = vector.broadcast %cst_63 : f32 to vector<136x128xf32>
      %109 = arith.subf %107, %108 : vector<136x128xf32>
      %110 = vector.shape_cast %109 : vector<136x128xf32> to vector<1x136x128xf32>
      %cst_64 = arith.constant dense<0.000000e+00> : vector<1xf32>
      %111 = vector.multi_reduction <add>, %110, %cst_64 [1, 2] : vector<1x136x128xf32> to vector<1xf32>
      %112 = vector.shape_cast %111 : vector<1xf32> to vector<1x1x1xf32>
      %113 = vector.extract %112[0, 0, 0] : f32 from vector<1x1x1xf32>
      %114 = arith.addf %70, %113 : f32
      %c1_65 = arith.constant 1 : index
      %c0_66 = arith.constant 0 : index
      %c0_67 = arith.constant 0 : index
      %115 = vector.load %arg5[%c1_65, %c0_66, %c0_67] : memref<3x136x128xf32, #tpu.memory_space<vmem>>, vector<1x136x128xf32>
      %116 = vector.shape_cast %115 : vector<1x136x128xf32> to vector<136x128xf32>
      %117 = vector.shape_cast %95 : vector<136x128xf32> to vector<1x136x128xf32>
      tpu.vector_store %arg5[%c1_65, %c0_66, %c0_67], %117 {strides = array<i32>} : memref<3x136x128xf32, #tpu.memory_space<vmem>>, vector<1x136x128xf32>,
      %c2_68 = arith.constant 2 : index
      %c0_69 = arith.constant 0 : index
      %c0_70 = arith.constant 0 : index
      %c0_71 = arith.constant 0 : index
      %118 = vector.load %arg2[%c2_68, %c0_69, %c0_70, %c0_71] : memref<3x3x136x128xf32, #tpu.memory_space<vmem>>, vector<1x1x136x128xf32>
      %119 = vector.shape_cast %118 : vector<1x1x136x128xf32> to vector<136x128xf32>
      %c2_72 = arith.constant 2 : index
      %c1_73 = arith.constant 1 : index
      %c0_74 = arith.constant 0 : index
      %c0_75 = arith.constant 0 : index
      %120 = vector.load %arg2[%c2_72, %c1_73, %c0_74, %c0_75] : memref<3x3x136x128xf32, #tpu.memory_space<vmem>>, vector<1x1x136x128xf32>
      %121 = vector.shape_cast %120 : vector<1x1x136x128xf32> to vector<136x128xf32>
      %c2_76 = arith.constant 2 : index
      %c2_77 = arith.constant 2 : index
      %c0_78 = arith.constant 0 : index
      %c0_79 = arith.constant 0 : index
      %122 = vector.load %arg2[%c2_76, %c2_77, %c0_78, %c0_79] : memref<3x3x136x128xf32, #tpu.memory_space<vmem>>, vector<1x1x136x128xf32>
      %123 = vector.shape_cast %122 : vector<1x1x136x128xf32> to vector<136x128xf32>
      %cst_80 = arith.constant 0.000000e+00 : f32
      %124 = vector.broadcast %cst_80 : f32 to vector<136x128xf32>
      %125 = arith.maximumf %121, %124 : vector<136x128xf32>
      %126 = vector.broadcast %cst_80 : f32 to vector<136x128xf32>
      %127 = arith.subf %121, %126 : vector<136x128xf32>
      %128 = arith.cmpf one, %127, %127 : vector<136x128xf32>
      %129 = vector.broadcast %cst_80 : f32 to vector<136x128xf32>
      %130 = arith.addf %121, %129 : vector<136x128xf32>
      %131 = math.absf %127 : vector<136x128xf32>
      %cst_81 = arith.constant 0.000000e+00 : f32
      %132 = vector.broadcast %cst_81 : f32 to vector<136x128xf32>
      %133 = arith.subf %132, %131 : vector<136x128xf32>
      %134 = math.exp %133 : vector<136x128xf32>
      %135 = math.log1p %134 : vector<136x128xf32>
      %136 = arith.addf %125, %135 : vector<136x128xf32>
      %137 = arith.select %128, %130, %136 : vector<136x128xi1>, vector<136x128xf32>
      %138 = arith.mulf %137, %123 : vector<136x128xf32>
      %139 = arith.addf %119, %138 : vector<136x128xf32>
      %140 = arith.mulf %137, %137 : vector<136x128xf32>
      %141 = tpu.reciprocal %140 : vector<136x128xf32> -> vector<136x128xf32>
      %cst_82 = arith.constant 5.000000e-01 : f32
      %142 = vector.broadcast %cst_82 : f32 to vector<136x128xf32>
      %143 = arith.mulf %142, %141 : vector<136x128xf32>
      %144 = math.log %137 : vector<136x128xf32>
      %cst_83 = arith.constant 0.000000e+00 : f32
      %145 = vector.broadcast %cst_83 : f32 to vector<136x128xf32>
      %146 = arith.subf %144, %145 : vector<136x128xf32>
      %147 = arith.mulf %139, %139 : vector<136x128xf32>
      %cst_84 = arith.constant 1.000000e+00 : f32
      %148 = vector.broadcast %cst_84 : f32 to vector<136x128xf32>
      %149 = arith.addf %148, %147 : vector<136x128xf32>
      %150 = arith.mulf %149, %143 : vector<136x128xf32>
      %151 = arith.addf %146, %150 : vector<136x128xf32>
      %cst_85 = arith.constant 5.000000e-01 : f32
      %152 = vector.broadcast %cst_85 : f32 to vector<136x128xf32>
      %153 = arith.subf %151, %152 : vector<136x128xf32>
      %154 = vector.shape_cast %153 : vector<136x128xf32> to vector<1x136x128xf32>
      %cst_86 = arith.constant dense<0.000000e+00> : vector<1xf32>
      %155 = vector.multi_reduction <add>, %154, %cst_86 [1, 2] : vector<1x136x128xf32> to vector<1xf32>
      %156 = vector.shape_cast %155 : vector<1xf32> to vector<1x1x1xf32>
      %157 = vector.extract %156[0, 0, 0] : f32 from vector<1x1x1xf32>
      %158 = arith.addf %114, %157 : f32
      %c2_87 = arith.constant 2 : index
      %c0_88 = arith.constant 0 : index
      %c0_89 = arith.constant 0 : index
      %159 = vector.load %arg5[%c2_87, %c0_88, %c0_89] : memref<3x136x128xf32, #tpu.memory_space<vmem>>, vector<1x136x128xf32>
      %160 = vector.shape_cast %159 : vector<1x136x128xf32> to vector<136x128xf32>
      %161 = vector.shape_cast %139 : vector<136x128xf32> to vector<1x136x128xf32>
      tpu.vector_store %arg5[%c2_87, %c0_88, %c0_89], %161 {strides = array<i32>} : memref<3x136x128xf32, #tpu.memory_space<vmem>>, vector<1x136x128xf32>,
      %c0_90 = arith.constant 0 : index
      %162 = memref.load %arg4[%c0_90] : memref<1xf32, #tpu.memory_space<smem>>
      memref.store %158, %arg4[%c0_90] : memref<1xf32, #tpu.memory_space<smem>>
    } else {
    }
    %c0 = arith.constant 0 : index
    %c0_1 = arith.constant 0 : index
    %3 = vector.load %arg1[%c0, %c0_1] : memref<8x128xf32, #tpu.memory_space<vmem>>, vector<8x128xf32>
    %c0_2 = arith.constant 0 : index
    %c0_3 = arith.constant 0 : index
    %c0_4 = arith.constant 0 : index
    %4 = vector.load %arg5[%c0_2, %c0_3, %c0_4] : memref<3x136x128xf32, #tpu.memory_space<vmem>>, vector<1x128x128xf32>
    %5 = vector.shape_cast %4 : vector<1x128x128xf32> to vector<128x128xf32>
    %c0_5 = arith.constant 0 : index
    %c128 = arith.constant 128 : index
    %c0_6 = arith.constant 0 : index
    %6 = vector.load %arg5[%c0_5, %c128, %c0_6] : memref<3x136x128xf32, #tpu.memory_space<vmem>>, vector<1x1x128xf32>
    %7 = vector.shape_cast %6 : vector<1x1x128xf32> to vector<1x128xf32>
    %cst = arith.constant dense<0.000000e+00> : vector<8x128xf32>
    %8 = tpu.matmul %3, %5, %cst {dimension_numbers = #tpu.dot_dimension_numbers<[1], [0], [0], [1], [0, 0, 1, 1], [], []>} : vector<8x128xf32>, vector<128x128xf32>, vector<8x128xf32> -> vector<8x128xf32>
    %9 = vector.broadcast %7 : vector<1x128xf32> to vector<8x128xf32>
    %10 = arith.addf %8, %9 : vector<8x128xf32>
    %cst_7 = arith.constant 0.000000e+00 : f32
    %11 = vector.broadcast %cst_7 : f32 to vector<8x128xf32>
    %12 = arith.maximumf %10, %11 : vector<8x128xf32>
    %c1 = arith.constant 1 : index
    %c0_8 = arith.constant 0 : index
    %c0_9 = arith.constant 0 : index
    %13 = vector.load %arg5[%c1, %c0_8, %c0_9] : memref<3x136x128xf32, #tpu.memory_space<vmem>>, vector<1x128x128xf32>
    %14 = vector.shape_cast %13 : vector<1x128x128xf32> to vector<128x128xf32>
    %c1_10 = arith.constant 1 : index
    %c128_11 = arith.constant 128 : index
    %c0_12 = arith.constant 0 : index
    %15 = vector.load %arg5[%c1_10, %c128_11, %c0_12] : memref<3x136x128xf32, #tpu.memory_space<vmem>>, vector<1x1x128xf32>
    %16 = vector.shape_cast %15 : vector<1x1x128xf32> to vector<1x128xf32>
    %cst_13 = arith.constant dense<0.000000e+00> : vector<8x128xf32>
    %17 = tpu.matmul %12, %14, %cst_13 {dimension_numbers = #tpu.dot_dimension_numbers<[1], [0], [0], [1], [0, 0, 1, 1], [], []>} : vector<8x128xf32>, vector<128x128xf32>, vector<8x128xf32> -> vector<8x128xf32>
    %18 = vector.broadcast %16 : vector<1x128xf32> to vector<8x128xf32>
    %19 = arith.addf %17, %18 : vector<8x128xf32>
    %cst_14 = arith.constant 0.000000e+00 : f32
    %20 = vector.broadcast %cst_14 : f32 to vector<8x128xf32>
    %21 = arith.maximumf %19, %20 : vector<8x128xf32>
    %c2 = arith.constant 2 : index
    %c0_15 = arith.constant 0 : index
    %c0_16 = arith.constant 0 : index
    %22 = vector.load %arg5[%c2, %c0_15, %c0_16] : memref<3x136x128xf32, #tpu.memory_space<vmem>>, vector<1x128x128xf32>
    %23 = vector.shape_cast %22 : vector<1x128x128xf32> to vector<128x128xf32>
    %c2_17 = arith.constant 2 : index
    %c128_18 = arith.constant 128 : index
    %c0_19 = arith.constant 0 : index
    %24 = vector.load %arg5[%c2_17, %c128_18, %c0_19] : memref<3x136x128xf32, #tpu.memory_space<vmem>>, vector<1x1x128xf32>
    %25 = vector.shape_cast %24 : vector<1x1x128xf32> to vector<1x128xf32>
    %cst_20 = arith.constant dense<0.000000e+00> : vector<8x128xf32>
    %26 = tpu.matmul %21, %23, %cst_20 {dimension_numbers = #tpu.dot_dimension_numbers<[1], [0], [0], [1], [0, 0, 1, 1], [], []>} : vector<8x128xf32>, vector<128x128xf32>, vector<8x128xf32> -> vector<8x128xf32>
    %27 = vector.broadcast %25 : vector<1x128xf32> to vector<8x128xf32>
    %28 = arith.addf %26, %27 : vector<8x128xf32>
    %c0_21 = arith.constant 0 : index
    %c0_22 = arith.constant 0 : index
    %29 = vector.load %arg3[%c0_21, %c0_22] : memref<8x128xf32, #tpu.memory_space<vmem>>, vector<8x128xf32>
    tpu.vector_store %arg3[%c0_21, %c0_22], %28 {strides = array<i32>} : memref<8x128xf32, #tpu.memory_space<vmem>>, vector<8x128xf32>,
    return
  }
  func.func @transform_0(%arg0: i32) -> (i32, i32) {
    %c0_i32 = arith.constant 0 : i32
    %c0_i32_0 = arith.constant 0 : i32
    return %arg0, %c0_i32 : i32, i32
  }
  func.func @transform_1(%arg0: i32) -> (i32, i32, i32, i32) {
    %c0_i32 = arith.constant 0 : i32
    %c0_i32_0 = arith.constant 0 : i32
    %c0_i32_1 = arith.constant 0 : i32
    %c0_i32_2 = arith.constant 0 : i32
    %c0_i32_3 = arith.constant 0 : i32
    return %c0_i32, %c0_i32_0, %c0_i32_1, %c0_i32_2 : i32, i32, i32, i32
  }
  func.func @transform_2(%arg0: i32) -> (i32, i32) {
    %c0_i32 = arith.constant 0 : i32
    %c0_i32_0 = arith.constant 0 : i32
    return %arg0, %c0_i32 : i32, i32
  }
  func.func @transform_3(%arg0: i32) -> i32 {
    %c0_i32 = arith.constant 0 : i32
    %c0_i32_0 = arith.constant 0 : i32
    return %c0_i32 : i32
  }
}

</mosaic_0001>

<llo_original>
// kernel: bnn_regressor_forward.1
$region0: #{bnn_regressor_forward.1}
  #allocation0 [shape = 'u32[]', space=smem, size = 0x4, offset = 0x4, fixed_abs, tag = 'smem constant byte address 0x4 - core index']
  #allocation1 [shape = 'u32[144,128]{1,0:T(1,128)}', space=vmem, size = 0x12000, scoped, tag = 'internal scratch']
  #allocation2 [shape = 'f32[3,136,128]{2,1,0:T(8,128)}', space=vmem, size = 0x33000, scoped, tag = 'scratch operand']
  %s0 = inlined_call_operand.vmem [shape: f32[8,128], index: 0, kind: input, shape index: {}]
  %s1 = inlined_call_operand.vmem [shape: f32[3,3,136,128], index: 1, kind: input, shape index: {}]
  %s2 = inlined_call_operand.vmem [shape: f32[8,128], index: 2, kind: output, shape index: {0}]
  %s3 = inlined_call_operand.hbm [shape: f32[1], index: 3, kind: output, shape index: {1}]
  %4 = xla_tuple %s2, %s3
  %s5 = sld [smem:[#allocation0]]
  $region30: #{bnn_regressor_forward.1} parent=0
    _
  %s7 = ssub.s32 1, %s5
  %s8 = scalar_select 0, %s7, %s5
  $region1: #{bnn_regressor_forward.1} parent=0
    #allocation3 [shape = 'u8[512]{0}', space=smem, size = 0x200, scoped, tag = 'output window, operand 1, single buffered']
    #allocation4 [shape = 's32[1]{0}', space=sflag, size = 0x4, scoped, tag = 'scoped memory for bnn_regressor_forward.1']
    %9 = vsyncpa [#allocation4], 0
    // Predicated region
    $region2: #{bnn_regressor_forward.1} parent=1 // pred_check
      _
    $region3: #{bnn_regressor_forward.1} parent=1 // pred_check_branch
      %11 = sbr.rel (0) target = $region5
    $region4: #{bnn_regressor_forward.1} parent=1 // pred_region
      _
    $region5: #{bnn_regressor_forward.1} parent=1 // pred_fallthru
      _
    // Predicated region
    $region6: #{bnn_regressor_forward.1} parent=1 // pred_check
      _
    $region7: #{bnn_regressor_forward.1} parent=1 // pred_check_branch
      %13 = sbr.rel (0) target = $region9
    $region8: #{bnn_regressor_forward.1} parent=1 // pred_region
      _
    $region9: #{bnn_regressor_forward.1} parent=1 // pred_fallthru
      _
    %p14 = scmp.eq.s32.totalorder 0, 0
    // Predicated region
    $region10: #{bnn_regressor_forward.1} parent=1 // pred_check
      %p15 = pneg %p14
    $region11: #{bnn_regressor_forward.1} parent=1 // pred_check_branch
      %17 = sbr.rel (%p15) target = $region13
    $region12: #{bnn_regressor_forward.1} parent=1 // pred_region
      %v18 = vld [vmem:[%s1] sm:$0xff]
      %v19 = vld [vmem:[%s1 + $0x8] sm:$0xff]
      %v20 = vld [vmem:[%s1 + $0x10] sm:$0xff]
      %v21 = vld [vmem:[%s1 + $0x18] sm:$0xff]
      %v22 = vld [vmem:[%s1 + $0x20] sm:$0xff]
      %v23 = vld [vmem:[%s1 + $0x28] sm:$0xff]
      %v24 = vld [vmem:[%s1 + $0x30] sm:$0xff]
      %v25 = vld [vmem:[%s1 + $0x38] sm:$0xff]
      %v26 = vld [vmem:[%s1 + $0x40] sm:$0xff]
      %v27 = vld [vmem:[%s1 + $0x48] sm:$0xff]
      %v28 = vld [vmem:[%s1 + $0x50] sm:$0xff]
      %v29 = vld [vmem:[%s1 + $0x58] sm:$0xff]
      %v30 = vld [vmem:[%s1 + $0x60] sm:$0xff]
      %v31 = vld [vmem:[%s1 + $0x68] sm:$0xff]
      %v32 = vld [vmem:[%s1 + $0x70] sm:$0xff]
      %v33 = vld [vmem:[%s1 + $0x78] sm:$0xff]
      %v34 = vld [vmem:[%s1 + $0x80] sm:$0xff]
      %s35 = scalar_lea.vmem %s1, 136
      %v36 = vld [vmem:[%s35] sm:$0xff]
      %v37 = vld [vmem:[%s35 + $0x8] sm:$0xff]
      %v38 = vld [vmem:[%s35 + $0x10] sm:$0xff]
      %v39 = vld [vmem:[%s35 + $0x18] sm:$0xff]
      %v40 = vld [vmem:[%s35 + $0x20] sm:$0xff]
      %v41 = vld [vmem:[%s35 + $0x28] sm:$0xff]
      %v42 = vld [vmem:[%s35 + $0x30] sm:$0xff]
      %v43 = vld [vmem:[%s35 + $0x38] sm:$0xff]
      %v44 = vld [vmem:[%s35 + $0x40] sm:$0xff]
      %v45 = vld [vmem:[%s35 + $0x48] sm:$0xff]
      %v46 = vld [vmem:[%s35 + $0x50] sm:$0xff]
      %v47 = vld [vmem:[%s35 + $0x58] sm:$0xff]
      %v48 = vld [vmem:[%s35 + $0x60] sm:$0xff]
      %v49 = vld [vmem:[%s35 + $0x68] sm:$0xff]
      %v50 = vld [vmem:[%s35 + $0x70] sm:$0xff]
      %v51 = vld [vmem:[%s35 + $0x78] sm:$0xff]
      %v52 = vld [vmem:[%s35 + $0x80] sm:$0xff]
      %s53 = scalar_lea.vmem %s1, 272
      %v54 = vld [vmem:[%s53] sm:$0xff]
      %v55 = vld [vmem:[%s53 + $0x8] sm:$0xff]
      %v56 = vld [vmem:[%s53 + $0x10] sm:$0xff]
      %v57 = vld [vmem:[%s53 + $0x18] sm:$0xff]
      %v58 = vld [vmem:[%s53 + $0x20] sm:$0xff]
      %v59 = vld [vmem:[%s53 + $0x28] sm:$0xff]
      %v60 = vld [vmem:[%s53 + $0x30] sm:$0xff]
      %v61 = vld [vmem:[%s53 + $0x38] sm:$0xff]
      %v62 = vld [vmem:[%s53 + $0x40] sm:$0xff]
      %v63 = vld [vmem:[%s53 + $0x48] sm:$0xff]
      %v64 = vld [vmem:[%s53 + $0x50] sm:$0xff]
      %v65 = vld [vmem:[%s53 + $0x58] sm:$0xff]
      %v66 = vld [vmem:[%s53 + $0x60] sm:$0xff]
      %v67 = vld [vmem:[%s53 + $0x68] sm:$0xff]
      %v68 = vld [vmem:[%s53 + $0x70] sm:$0xff]
      %v69 = vld [vmem:[%s53 + $0x78] sm:$0xff]
      %v70 = vld [vmem:[%s53 + $0x80] sm:$0xff]
      %v71 = vmax.f32 %v36, 0.0
      %v72 = vmax.f32 %v37, 0.0
      %v73 = vmax.f32 %v38, 0.0
      %v74 = vmax.f32 %v39, 0.0
      %v75 = vmax.f32 %v40, 0.0
      %v76 = vmax.f32 %v41, 0.0
      %v77 = vmax.f32 %v42, 0.0
      %v78 = vmax.f32 %v43, 0.0
      %v79 = vmax.f32 %v44, 0.0
      %v80 = vmax.f32 %v45, 0.0
      %v81 = vmax.f32 %v46, 0.0
      %v82 = vmax.f32 %v47, 0.0
      %v83 = vmax.f32 %v48, 0.0
      %v84 = vmax.f32 %v49, 0.0
      %v85 = vmax.f32 %v50, 0.0
      %v86 = vmax.f32 %v51, 0.0
      %v87 = vmax.f32 %v52, 0.0
      %vm88 = vcmp.ne.f32.partialorder %v36, %v36
      %vm89 = vcmp.ne.f32.partialorder %v37, %v37
      %vm90 = vcmp.ne.f32.partialorder %v38, %v38
      %vm91 = vcmp.ne.f32.partialorder %v39, %v39
      %vm92 = vcmp.ne.f32.partialorder %v40, %v40
      %vm93 = vcmp.ne.f32.partialorder %v41, %v41
      %vm94 = vcmp.ne.f32.partialorder %v42, %v42
      %vm95 = vcmp.ne.f32.partialorder %v43, %v43
      %vm96 = vcmp.ne.f32.partialorder %v44, %v44
      %vm97 = vcmp.ne.f32.partialorder %v45, %v45
      %vm98 = vcmp.ne.f32.partialorder %v46, %v46
      %vm99 = vcmp.ne.f32.partialorder %v47, %v47
      %vm100 = vcmp.ne.f32.partialorder %v48, %v48
      %vm101 = vcmp.ne.f32.partialorder %v49, %v49
      %vm102 = vcmp.ne.f32.partialorder %v50, %v50
      %vm103 = vcmp.ne.f32.partialorder %v51, %v51
      %vm104 = vcmp.ne.f32.partialorder %v52, %v52
      %v105 = vadd.f32 %v36, 0.0
      %v106 = vadd.f32 %v37, 0.0
      %v107 = vadd.f32 %v38, 0.0
      %v108 = vadd.f32 %v39, 0.0
      %v109 = vadd.f32 %v40, 0.0
      %v110 = vadd.f32 %v41, 0.0
      %v111 = vadd.f32 %v42, 0.0
      %v112 = vadd.f32 %v43, 0.0
      %v113 = vadd.f32 %v44, 0.0
      %v114 = vadd.f32 %v45, 0.0
      %v115 = vadd.f32 %v46, 0.0
      %v116 = vadd.f32 %v47, 0.0
      %v117 = vadd.f32 %v48, 0.0
      %v118 = vadd.f32 %v49, 0.0
      %v119 = vadd.f32 %v50, 0.0
      %v120 = vadd.f32 %v51, 0.0
      %v121 = vadd.f32 %v52, 0.0
      %v122 = vand.u32 2147483647, %v36
      %v123 = vand.u32 2147483647, %v37
      %v124 = vand.u32 2147483647, %v38
      %v125 = vand.u32 2147483647, %v39
      %v126 = vand.u32 2147483647, %v40
      %v127 = vand.u32 2147483647, %v41
      %v128 = vand.u32 2147483647, %v42
      %v129 = vand.u32 2147483647, %v43
      %v130 = vand.u32 2147483647, %v44
      %v131 = vand.u32 2147483647, %v45
      %v132 = vand.u32 2147483647, %v46
      %v133 = vand.u32 2147483647, %v47
      %v134 = vand.u32 2147483647, %v48
      %v135 = vand.u32 2147483647, %v49
      %v136 = vand.u32 2147483647, %v50
      %v137 = vand.u32 2147483647, %v51
      %v138 = vand.u32 2147483647, %v52
      %v139 = vsub.f32 0.0, %v122
      %v140 = vsub.f32 0.0, %v123
      %v141 = vsub.f32 0.0, %v124
      %v142 = vsub.f32 0.0, %v125
      %v143 = vsub.f32 0.0, %v126
      %v144 = vsub.f32 0.0, %v127
      %v145 = vsub.f32 0.0, %v128
      %v146 = vsub.f32 0.0, %v129
      %v147 = vsub.f32 0.0, %v130
      %v148 = vsub.f32 0.0, %v131
      %v149 = vsub.f32 0.0, %v132
      %v150 = vsub.f32 0.0, %v133
      %v151 = vsub.f32 0.0, %v134
      %v152 = vsub.f32 0.0, %v135
      %v153 = vsub.f32 0.0, %v136
      %v154 = vsub.f32 0.0, %v137
      %v155 = vsub.f32 0.0, %v138
      %v156 = vmul.f32 %v139, 1.442695
      %v157 = vpow.pop %v156
      %v158 = vmul.f32 %v140, 1.442695
      %v159 = vpow.pop %v158
      %v160 = vmul.f32 %v141, 1.442695
      %v161 = vpow.pop %v160
      %v162 = vmul.f32 %v142, 1.442695
      %v163 = vpow.pop %v162
      %v164 = vmul.f32 %v143, 1.442695
      %v165 = vpow.pop %v164
      %v166 = vmul.f32 %v144, 1.442695
      %v167 = vpow.pop %v166
      %v168 = vmul.f32 %v145, 1.442695
      %v169 = vpow.pop %v168
      %v170 = vmul.f32 %v146, 1.442695
      %v171 = vpow.pop %v170
      %v172 = vmul.f32 %v147, 1.442695
      %v173 = vpow.pop %v172
      %v174 = vmul.f32 %v148, 1.442695
      %v175 = vpow.pop %v174
      %v176 = vmul.f32 %v149, 1.442695
      %v177 = vpow.pop %v176
      %v178 = vmul.f32 %v150, 1.442695
      %v179 = vpow.pop %v178
      %v180 = vmul.f32 %v151, 1.442695
      %v181 = vpow.pop %v180
      %v182 = vmul.f32 %v152, 1.442695
      %v183 = vpow.pop %v182
      %v184 = vmul.f32 %v153, 1.442695
      %v185 = vpow.pop %v184
      %v186 = vmul.f32 %v154, 1.442695
      %v187 = vpow.pop %v186
      %v188 = vmul.f32 %v155, 1.442695
      %v189 = vpow.pop %v188
      %v190 = vadd.f32 %v157, 1.0
      %v191 = vlog2.pop %v190
      %v192 = vmul.f32 %v191, 0.6931472
      %v193 = vmul.f32 -0.5, %v157
      %v194 = vadd.f32 %v193, 1.0
      %v195 = vmul.f32 %v194, %v157
      %v196 = vand.u32 2147483647, %v157
      %vm197 = vcmp.lt.f32.partialorder %v196, 0.0004427343
      %v198 = vsel %vm197, %v195, %v192
      %v199 = vadd.f32 %v159, 1.0
      %v200 = vlog2.pop %v199
      %v201 = vmul.f32 %v200, 0.6931472
      %v202 = vmul.f32 -0.5, %v159
      %v203 = vadd.f32 %v202, 1.0
      %v204 = vmul.f32 %v203, %v159
      %v205 = vand.u32 2147483647, %v159
      %vm206 = vcmp.lt.f32.partialorder %v205, 0.0004427343
      %v207 = vsel %vm206, %v204, %v201
      %v208 = vadd.f32 %v161, 1.0
      %v209 = vlog2.pop %v208
      %v210 = vmul.f32 %v209, 0.6931472
      %v211 = vmul.f32 -0.5, %v161
      %v212 = vadd.f32 %v211, 1.0
      %v213 = vmul.f32 %v212, %v161
      %v214 = vand.u32 2147483647, %v161
      %vm215 = vcmp.lt.f32.partialorder %v214, 0.0004427343
      %v216 = vsel %vm215, %v213, %v210
      %v217 = vadd.f32 %v163, 1.0
      %v218 = vlog2.pop %v217
      %v219 = vmul.f32 %v218, 0.6931472
      %v220 = vmul.f32 -0.5, %v163
      %v221 = vadd.f32 %v220, 1.0
      %v222 = vmul.f32 %v221, %v163
      %v223 = vand.u32 2147483647, %v163
      %vm224 = vcmp.lt.f32.partialorder %v223, 0.0004427343
      %v225 = vsel %vm224, %v222, %v219
      %v226 = vadd.f32 %v165, 1.0
      %v227 = vlog2.pop %v226
      %v228 = vmul.f32 %v227, 0.6931472
      %v229 = vmul.f32 -0.5, %v165
      %v230 = vadd.f32 %v229, 1.0
      %v231 = vmul.f32 %v230, %v165
      %v232 = vand.u32 2147483647, %v165
      %vm233 = vcmp.lt.f32.partialorder %v232, 0.0004427343
      %v234 = vsel %vm233, %v231, %v228
      %v235 = vadd.f32 %v167, 1.0
      %v236 = vlog2.pop %v235
      %v237 = vmul.f32 %v236, 0.6931472
      %v238 = vmul.f32 -0.5, %v167
      %v239 = vadd.f32 %v238, 1.0
      %v240 = vmul.f32 %v239, %v167
      %v241 = vand.u32 2147483647, %v167
      %vm242 = vcmp.lt.f32.partialorder %v241, 0.0004427343
      %v243 = vsel %vm242, %v240, %v237
      %v244 = vadd.f32 %v169, 1.0
      %v245 = vlog2.pop %v244
      %v246 = vmul.f32 %v245, 0.6931472
      %v247 = vmul.f32 -0.5, %v169
      %v248 = vadd.f32 %v247, 1.0
      %v249 = vmul.f32 %v248, %v169
      %v250 = vand.u32 2147483647, %v169
      %vm251 = vcmp.lt.f32.partialorder %v250, 0.0004427343
      %v252 = vsel %vm251, %v249, %v246
      %v253 = vadd.f32 %v171, 1.0
      %v254 = vlog2.pop %v253
      %v255 = vmul.f32 %v254, 0.6931472
      %v256 = vmul.f32 -0.5, %v171
      %v257 = vadd.f32 %v256, 1.0
      %v258 = vmul.f32 %v257, %v171
      %v259 = vand.u32 2147483647, %v171
      %vm260 = vcmp.lt.f32.partialorder %v259, 0.0004427343
      %v261 = vsel %vm260, %v258, %v255
      %v262 = vadd.f32 %v173, 1.0
      %v263 = vlog2.pop %v262
      %v264 = vmul.f32 %v263, 0.6931472
      %v265 = vmul.f32 -0.5, %v173
      %v266 = vadd.f32 %v265, 1.0
      %v267 = vmul.f32 %v266, %v173
      %v268 = vand.u32 2147483647, %v173
      %vm269 = vcmp.lt.f32.partialorder %v268, 0.0004427343
      %v270 = vsel %vm269, %v267, %v264
      %v271 = vadd.f32 %v175, 1.0
      %v272 = vlog2.pop %v271
      %v273 = vmul.f32 %v272, 0.6931472
      %v274 = vmul.f32 -0.5, %v175
      %v275 = vadd.f32 %v274, 1.0
      %v276 = vmul.f32 %v275, %v175
      %v277 = vand.u32 2147483647, %v175
      %vm278 = vcmp.lt.f32.partialorder %v277, 0.0004427343
      %v279 = vsel %vm278, %v276, %v273
      %v280 = vadd.f32 %v177, 1.0
      %v281 = vlog2.pop %v280
      %v282 = vmul.f32 %v281, 0.6931472
      %v283 = vmul.f32 -0.5, %v177
      %v284 = vadd.f32 %v283, 1.0
      %v285 = vmul.f32 %v284, %v177
      %v286 = vand.u32 2147483647, %v177
      %vm287 = vcmp.lt.f32.partialorder %v286, 0.0004427343
      %v288 = vsel %vm287, %v285, %v282
      %v289 = vadd.f32 %v179, 1.0
      %v290 = vlog2.pop %v289
      %v291 = vmul.f32 %v290, 0.6931472
      %v292 = vmul.f32 -0.5, %v179
      %v293 = vadd.f32 %v292, 1.0
      %v294 = vmul.f32 %v293, %v179
      %v295 = vand.u32 2147483647, %v179
      %vm296 = vcmp.lt.f32.partialorder %v295, 0.0004427343
      %v297 = vsel %vm296, %v294, %v291
      %v298 = vadd.f32 %v181, 1.0
      %v299 = vlog2.pop %v298
      %v300 = vmul.f32 %v299, 0.6931472
      %v301 = vmul.f32 -0.5, %v181
      %v302 = vadd.f32 %v301, 1.0
      %v303 = vmul.f32 %v302, %v181
      %v304 = vand.u32 2147483647, %v181
      %vm305 = vcmp.lt.f32.partialorder %v304, 0.0004427343
      %v306 = vsel %vm305, %v303, %v300
      %v307 = vadd.f32 %v183, 1.0
      %v308 = vlog2.pop %v307
      %v309 = vmul.f32 %v308, 0.6931472
      %v310 = vmul.f32 -0.5, %v183
      %v311 = vadd.f32 %v310, 1.0
      %v312 = vmul.f32 %v311, %v183
      %v313 = vand.u32 2147483647, %v183
      %vm314 = vcmp.lt.f32.partialorder %v313, 0.0004427343
      %v315 = vsel %vm314, %v312, %v309
      %v316 = vadd.f32 %v185, 1.0
      %v317 = vlog2.pop %v316
      %v318 = vmul.f32 %v317, 0.6931472
      %v319 = vmul.f32 -0.5, %v185
      %v320 = vadd.f32 %v319, 1.0
      %v321 = vmul.f32 %v320, %v185
      %v322 = vand.u32 2147483647, %v185
      %vm323 = vcmp.lt.f32.partialorder %v322, 0.0004427343
      %v324 = vsel %vm323, %v321, %v318
      %v325 = vadd.f32 %v187, 1.0
      %v326 = vlog2.pop %v325
      %v327 = vmul.f32 %v326, 0.6931472
      %v328 = vmul.f32 -0.5, %v187
      %v329 = vadd.f32 %v328, 1.0
      %v330 = vmul.f32 %v329, %v187
      %v331 = vand.u32 2147483647, %v187
      %vm332 = vcmp.lt.f32.partialorder %v331, 0.0004427343
      %v333 = vsel %vm332, %v330, %v327
      %v334 = vadd.f32 %v189, 1.0
      %v335 = vlog2.pop %v334
      %v336 = vmul.f32 %v335, 0.6931472
      %v337 = vmul.f32 -0.5, %v189
      %v338 = vadd.f32 %v337, 1.0
      %v339 = vmul.f32 %v338, %v189
      %v340 = vand.u32 2147483647, %v189
      %vm341 = vcmp.lt.f32.partialorder %v340, 0.0004427343
      %v342 = vsel %vm341, %v339, %v336
      %v343 = vadd.f32 %v71, %v198
      %v344 = vadd.f32 %v72, %v207
      %v345 = vadd.f32 %v73, %v216
      %v346 = vadd.f32 %v74, %v225
      %v347 = vadd.f32 %v75, %v234
      %v348 = vadd.f32 %v76, %v243
      %v349 = vadd.f32 %v77, %v252
      %v350 = vadd.f32 %v78, %v261
      %v351 = vadd.f32 %v79, %v270
      %v352 = vadd.f32 %v80, %v279
      %v353 = vadd.f32 %v81, %v288
      %v354 = vadd.f32 %v82, %v297
      %v355 = vadd.f32 %v83, %v306
      %v356 = vadd.f32 %v84, %v315
      %v357 = vadd.f32 %v85, %v324
      %v358 = vadd.f32 %v86, %v333
      %v359 = vadd.f32 %v87, %v342
      %v360 = vsel %vm88, %v105, %v343
      %v361 = vsel %vm89, %v106, %v344
      %v362 = vsel %vm90, %v107, %v345
      %v363 = vsel %vm91, %v108, %v346
      %v364 = vsel %vm92, %v109, %v347
      %v365 = vsel %vm93, %v110, %v348
      %v366 = vsel %vm94, %v111, %v349
      %v367 = vsel %vm95, %v112, %v350
      %v368 = vsel %vm96, %v113, %v351
      %v369 = vsel %vm97, %v114, %v352
      %v370 = vsel %vm98, %v115, %v353
      %v371 = vsel %vm99, %v116, %v354
      %v372 = vsel %vm100, %v117, %v355
      %v373 = vsel %vm101, %v118, %v356
      %v374 = vsel %vm102, %v119, %v357
      %v375 = vsel %vm103, %v120, %v358
      %v376 = vsel %vm104, %v121, %v359
      %v377 = vmul.f32 %v360, %v54
      %v378 = vmul.f32 %v361, %v55
      %v379 = vmul.f32 %v362, %v56
      %v380 = vmul.f32 %v363, %v57
      %v381 = vmul.f32 %v364, %v58
      %v382 = vmul.f32 %v365, %v59
      %v383 = vmul.f32 %v366, %v60
      %v384 = vmul.f32 %v367, %v61
      %v385 = vmul.f32 %v368, %v62
      %v386 = vmul.f32 %v369, %v63
      %v387 = vmul.f32 %v370, %v64
      %v388 = vmul.f32 %v371, %v65
      %v389 = vmul.f32 %v372, %v66
      %v390 = vmul.f32 %v373, %v67
      %v391 = vmul.f32 %v374, %v68
      %v392 = vmul.f32 %v375, %v69
      %v393 = vmul.f32 %v376, %v70
      %v394 = vadd.f32 %v18, %v377
      %v395 = vadd.f32 %v19, %v378
      %v396 = vadd.f32 %v20, %v379
      %v397 = vadd.f32 %v21, %v380
      %v398 = vadd.f32 %v22, %v381
      %v399 = vadd.f32 %v23, %v382
      %v400 = vadd.f32 %v24, %v383
      %v401 = vadd.f32 %v25, %v384
      %v402 = vadd.f32 %v26, %v385
      %v403 = vadd.f32 %v27, %v386
      %v404 = vadd.f32 %v28, %v387
      %v405 = vadd.f32 %v29, %v388
      %v406 = vadd.f32 %v30, %v389
      %v407 = vadd.f32 %v31, %v390
      %v408 = vadd.f32 %v32, %v391
      %v409 = vadd.f32 %v33, %v392
      %v410 = vadd.f32 %v34, %v393
      %v411 = vmul.f32 %v360, %v360
      %v412 = vmul.f32 %v361, %v361
      %v413 = vmul.f32 %v362, %v362
      %v414 = vmul.f32 %v363, %v363
      %v415 = vmul.f32 %v364, %v364
      %v416 = vmul.f32 %v365, %v365
      %v417 = vmul.f32 %v366, %v366
      %v418 = vmul.f32 %v367, %v367
      %v419 = vmul.f32 %v368, %v368
      %v420 = vmul.f32 %v369, %v369
      %v421 = vmul.f32 %v370, %v370
      %v422 = vmul.f32 %v371, %v371
      %v423 = vmul.f32 %v372, %v372
      %v424 = vmul.f32 %v373, %v373
      %v425 = vmul.f32 %v374, %v374
      %v426 = vmul.f32 %v375, %v375
      %v427 = vmul.f32 %v376, %v376
      %v428 = vrcp.pop %v411
      %v429 = vrcp.pop %v412
      %v430 = vrcp.pop %v413
      %v431 = vrcp.pop %v414
      %v432 = vrcp.pop %v415
      %v433 = vrcp.pop %v416
      %v434 = vrcp.pop %v417
      %v435 = vrcp.pop %v418
      %v436 = vrcp.pop %v419
      %v437 = vrcp.pop %v420
      %v438 = vrcp.pop %v421
      %v439 = vrcp.pop %v422
      %v440 = vrcp.pop %v423
      %v441 = vrcp.pop %v424
      %v442 = vrcp.pop %v425
      %v443 = vrcp.pop %v426
      %v444 = vrcp.pop %v427
      %v445 = vmul.f32 %v428, 0.5
      %v446 = vmul.f32 %v429, 0.5
      %v447 = vmul.f32 %v430, 0.5
      %v448 = vmul.f32 %v431, 0.5
      %v449 = vmul.f32 %v432, 0.5
      %v450 = vmul.f32 %v433, 0.5
      %v451 = vmul.f32 %v434, 0.5
      %v452 = vmul.f32 %v435, 0.5
      %v453 = vmul.f32 %v436, 0.5
      %v454 = vmul.f32 %v437, 0.5
      %v455 = vmul.f32 %v438, 0.5
      %v456 = vmul.f32 %v439, 0.5
      %v457 = vmul.f32 %v440, 0.5
      %v458 = vmul.f32 %v441, 0.5
      %v459 = vmul.f32 %v442, 0.5
      %v460 = vmul.f32 %v443, 0.5
      %v461 = vmul.f32 %v444, 0.5
      %v462 = vlog2.pop %v360
      %v463 = vmul.f32 %v462, 0.6931472
      %v464 = vlog2.pop %v361
      %v465 = vmul.f32 %v464, 0.6931472
      %v466 = vlog2.pop %v362
      %v467 = vmul.f32 %v466, 0.6931472
      %v468 = vlog2.pop %v363
      %v469 = vmul.f32 %v468, 0.6931472
      %v470 = vlog2.pop %v364
      %v471 = vmul.f32 %v470, 0.6931472
      %v472 = vlog2.pop %v365
      %v473 = vmul.f32 %v472, 0.6931472
      %v474 = vlog2.pop %v366
      %v475 = vmul.f32 %v474, 0.6931472
      %v476 = vlog2.pop %v367
      %v477 = vmul.f32 %v476, 0.6931472
      %v478 = vlog2.pop %v368
      %v479 = vmul.f32 %v478, 0.6931472
      %v480 = vlog2.pop %v369
      %v481 = vmul.f32 %v480, 0.6931472
      %v482 = vlog2.pop %v370
      %v483 = vmul.f32 %v482, 0.6931472
      %v484 = vlog2.pop %v371
      %v485 = vmul.f32 %v484, 0.6931472
      %v486 = vlog2.pop %v372
      %v487 = vmul.f32 %v486, 0.6931472
      %v488 = vlog2.pop %v373
      %v489 = vmul.f32 %v488, 0.6931472
      %v490 = vlog2.pop %v374
      %v491 = vmul.f32 %v490, 0.6931472
      %v492 = vlog2.pop %v375
      %v493 = vmul.f32 %v492, 0.6931472
      %v494 = vlog2.pop %v376
      %v495 = vmul.f32 %v494, 0.6931472
      %v496 = vmul.f32 %v394, %v394
      %v497 = vmul.f32 %v395, %v395
      %v498 = vmul.f32 %v396, %v396
      %v499 = vmul.f32 %v397, %v397
      %v500 = vmul.f32 %v398, %v398
      %v501 = vmul.f32 %v399, %v399
      %v502 = vmul.f32 %v400, %v400
      %v503 = vmul.f32 %v401, %v401
      %v504 = vmul.f32 %v402, %v402
      %v505 = vmul.f32 %v403, %v403
      %v506 = vmul.f32 %v404, %v404
      %v507 = vmul.f32 %v405, %v405
      %v508 = vmul.f32 %v406, %v406
      %v509 = vmul.f32 %v407, %v407
      %v510 = vmul.f32 %v408, %v408
      %v511 = vmul.f32 %v409, %v409
      %v512 = vmul.f32 %v410, %v410
      %v513 = vadd.f32 %v496, 1.0
      %v514 = vadd.f32 %v497, 1.0
      %v515 = vadd.f32 %v498, 1.0
      %v516 = vadd.f32 %v499, 1.0
      %v517 = vadd.f32 %v500, 1.0
      %v518 = vadd.f32 %v501, 1.0
      %v519 = vadd.f32 %v502, 1.0
      %v520 = vadd.f32 %v503, 1.0
      %v521 = vadd.f32 %v504, 1.0
      %v522 = vadd.f32 %v505, 1.0
      %v523 = vadd.f32 %v506, 1.0
      %v524 = vadd.f32 %v507, 1.0
      %v525 = vadd.f32 %v508, 1.0
      %v526 = vadd.f32 %v509, 1.0
      %v527 = vadd.f32 %v510, 1.0
      %v528 = vadd.f32 %v511, 1.0
      %v529 = vadd.f32 %v512, 1.0
      %v530 = vmul.f32 %v513, %v445
      %v531 = vmul.f32 %v514, %v446
      %v532 = vmul.f32 %v515, %v447
      %v533 = vmul.f32 %v516, %v448
      %v534 = vmul.f32 %v517, %v449
      %v535 = vmul.f32 %v518, %v450
      %v536 = vmul.f32 %v519, %v451
      %v537 = vmul.f32 %v520, %v452
      %v538 = vmul.f32 %v521, %v453
      %v539 = vmul.f32 %v522, %v454
      %v540 = vmul.f32 %v523, %v455
      %v541 = vmul.f32 %v524, %v456
      %v542 = vmul.f32 %v525, %v457
      %v543 = vmul.f32 %v526, %v458
      %v544 = vmul.f32 %v527, %v459
      %v545 = vmul.f32 %v528, %v460
      %v546 = vmul.f32 %v529, %v461
      %v547 = vadd.f32 %v463, %v530
      %v548 = vadd.f32 %v465, %v531
      %v549 = vadd.f32 %v467, %v532
      %v550 = vadd.f32 %v469, %v533
      %v551 = vadd.f32 %v471, %v534
      %v552 = vadd.f32 %v473, %v535
      %v553 = vadd.f32 %v475, %v536
      %v554 = vadd.f32 %v477, %v537
      %v555 = vadd.f32 %v479, %v538
      %v556 = vadd.f32 %v481, %v539
      %v557 = vadd.f32 %v483, %v540
      %v558 = vadd.f32 %v485, %v541
      %v559 = vadd.f32 %v487, %v542
      %v560 = vadd.f32 %v489, %v543
      %v561 = vadd.f32 %v491, %v544
      %v562 = vadd.f32 %v493, %v545
      %v563 = vadd.f32 %v495, %v546
      %v564 = vsub.f32 %v547, 0.5
      %v565 = vsub.f32 %v548, 0.5
      %v566 = vsub.f32 %v549, 0.5
      %v567 = vsub.f32 %v550, 0.5
      %v568 = vsub.f32 %v551, 0.5
      %v569 = vsub.f32 %v552, 0.5
      %v570 = vsub.f32 %v553, 0.5
      %v571 = vsub.f32 %v554, 0.5
      %v572 = vsub.f32 %v555, 0.5
      %v573 = vsub.f32 %v556, 0.5
      %v574 = vsub.f32 %v557, 0.5
      %v575 = vsub.f32 %v558, 0.5
      %v576 = vsub.f32 %v559, 0.5
      %v577 = vsub.f32 %v560, 0.5
      %v578 = vsub.f32 %v561, 0.5
      %v579 = vsub.f32 %v562, 0.5
      %v580 = vsub.f32 %v563, 0.5
      %v581 = vadd.f32 %v564, %v565
      %v582 = vadd.f32 %v581, %v566
      %v583 = vadd.f32 %v582, %v567
      %v584 = vadd.f32 %v583, %v568
      %v585 = vadd.f32 %v584, %v569
      %v586 = vadd.f32 %v585, %v570
      %v587 = vadd.f32 %v586, %v571
      %v588 = vadd.f32 %v587, %v572
      %v589 = vadd.f32 %v588, %v573
      %v590 = vadd.f32 %v589, %v574
      %v591 = vadd.f32 %v590, %v575
      %v592 = vadd.f32 %v591, %v576
      %v593 = vadd.f32 %v592, %v577
      %v594 = vadd.f32 %v593, %v578
      %v595 = vadd.f32 %v594, %v579
      %v596 = vadd.f32 %v595, %v580
      %597 = vadd.xlane.f32.xlu0 %v596
      %v598 = vpop.xlane.xlu0 %597
      %v599 = vrot.slane %v598, 4
      %v600 = vadd.f32 %v598, %v599
      %v601 = vrot.slane %v600, 2
      %v602 = vadd.f32 %v600, %v601
      %v603 = vrot.slane %v602, 1
      %v604 = vadd.f32 %v602, %v603
      %s605 = vtos %v604
      %s606 = sadd.f32 %s605, 0.0
      %607 = vst [vmem:[#allocation2] sm:$0xff] %v394
      %608 = vst [vmem:[#allocation2 + $0x8] sm:$0xff] %v395
      %609 = vst [vmem:[#allocation2 + $0x10] sm:$0xff] %v396
      %610 = vst [vmem:[#allocation2 + $0x18] sm:$0xff] %v397
      %611 = vst [vmem:[#allocation2 + $0x20] sm:$0xff] %v398
      %612 = vst [vmem:[#allocation2 + $0x28] sm:$0xff] %v399
      %613 = vst [vmem:[#allocation2 + $0x30] sm:$0xff] %v400
      %614 = vst [vmem:[#allocation2 + $0x38] sm:$0xff] %v401
      %615 = vst [vmem:[#allocation2 + $0x40] sm:$0xff] %v402
      %616 = vst [vmem:[#allocation2 + $0x48] sm:$0xff] %v403
      %617 = vst [vmem:[#allocation2 + $0x50] sm:$0xff] %v404
      %618 = vst [vmem:[#allocation2 + $0x58] sm:$0xff] %v405
      %619 = vst [vmem:[#allocation2 + $0x60] sm:$0xff] %v406
      %620 = vst [vmem:[#allocation2 + $0x68] sm:$0xff] %v407
      %621 = vst [vmem:[#allocation2 + $0x70] sm:$0xff] %v408
      %622 = vst [vmem:[#allocation2 + $0x78] sm:$0xff] %v409
      %623 = vst [vmem:[#allocation2 + $0x80] sm:$0xff] %v410
      %s624 = scalar_lea.vmem %s1, 408
      %v625 = vld [vmem:[%s624] sm:$0xff]
      %v626 = vld [vmem:[%s624 + $0x8] sm:$0xff]
      %v627 = vld [vmem:[%s624 + $0x10] sm:$0xff]
      %v628 = vld [vmem:[%s624 + $0x18] sm:$0xff]
      %v629 = vld [vmem:[%s624 + $0x20] sm:$0xff]
      %v630 = vld [vmem:[%s624 + $0x28] sm:$0xff]
      %v631 = vld [vmem:[%s624 + $0x30] sm:$0xff]
      %v632 = vld [vmem:[%s624 + $0x38] sm:$0xff]
      %v633 = vld [vmem:[%s624 + $0x40] sm:$0xff]
      %v634 = vld [vmem:[%s624 + $0x48] sm:$0xff]
      %v635 = vld [vmem:[%s624 + $0x50] sm:$0xff]
      %v636 = vld [vmem:[%s624 + $0x58] sm:$0xff]
      %v637 = vld [vmem:[%s624 + $0x60] sm:$0xff]
      %v638 = vld [vmem:[%s624 + $0x68] sm:$0xff]
      %v639 = vld [vmem:[%s624 + $0x70] sm:$0xff]
      %v640 = vld [vmem:[%s624 + $0x78] sm:$0xff]
      %v641 = vld [vmem:[%s624 + $0x80] sm:$0xff]
      %s642 = scalar_lea.vmem %s1, 544
      %v643 = vld [vmem:[%s642] sm:$0xff]
      %v644 = vld [vmem:[%s642 + $0x8] sm:$0xff]
      %v645 = vld [vmem:[%s642 + $0x10] sm:$0xff]
      %v646 = vld [vmem:[%s642 + $0x18] sm:$0xff]
      %v647 = vld [vmem:[%s642 + $0x20] sm:$0xff]
      %v648 = vld [vmem:[%s642 + $0x28] sm:$0xff]
      %v649 = vld [vmem:[%s642 + $0x30] sm:$0xff]
      %v650 = vld [vmem:[%s642 + $0x38] sm:$0xff]
      %v651 = vld [vmem:[%s642 + $0x40] sm:$0xff]
      %v652 = vld [vmem:[%s642 + $0x48] sm:$0xff]
      %v653 = vld [vmem:[%s642 + $0x50] sm:$0xff]
      %v654 = vld [vmem:[%s642 + $0x58] sm:$0xff]
      %v655 = vld [vmem:[%s642 + $0x60] sm:$0xff]
      %v656 = vld [vmem:[%s642 + $0x68] sm:$0xff]
      %v657 = vld [vmem:[%s642 + $0x70] sm:$0xff]
      %v658 = vld [vmem:[%s642 + $0x78] sm:$0xff]
      %v659 = vld [vmem:[%s642 + $0x80] sm:$0xff]
      %s660 = scalar_lea.vmem %s1, 680
      %v661 = vld [vmem:[%s660] sm:$0xff]
      %v662 = vld [vmem:[%s660 + $0x8] sm:$0xff]
      %v663 = vld [vmem:[%s660 + $0x10] sm:$0xff]
      %v664 = vld [vmem:[%s660 + $0x18] sm:$0xff]
      %v665 = vld [vmem:[%s660 + $0x20] sm:$0xff]
      %v666 = vld [vmem:[%s660 + $0x28] sm:$0xff]
      %v667 = vld [vmem:[%s660 + $0x30] sm:$0xff]
      %v668 = vld [vmem:[%s660 + $0x38] sm:$0xff]
      %v669 = vld [vmem:[%s660 + $0x40] sm:$0xff]
      %v670 = vld [vmem:[%s660 + $0x48] sm:$0xff]
      %v671 = vld [vmem:[%s660 + $0x50] sm:$0xff]
      %v672 = vld [vmem:[%s660 + $0x58] sm:$0xff]
      %v673 = vld [vmem:[%s660 + $0x60] sm:$0xff]
      %v674 = vld [vmem:[%s660 + $0x68] sm:$0xff]
      %v675 = vld [vmem:[%s660 + $0x70] sm:$0xff]
      %v676 = vld [vmem:[%s660 + $0x78] sm:$0xff]
      %v677 = vld [vmem:[%s660 + $0x80] sm:$0xff]
      %v678 = vmax.f32 %v643, 0.0
      %v679 = vmax.f32 %v644, 0.0
      %v680 = vmax.f32 %v645, 0.0
      %v681 = vmax.f32 %v646, 0.0
      %v682 = vmax.f32 %v647, 0.0
      %v683 = vmax.f32 %v648, 0.0
      %v684 = vmax.f32 %v649, 0.0
      %v685 = vmax.f32 %v650, 0.0
      %v686 = vmax.f32 %v651, 0.0
      %v687 = vmax.f32 %v652, 0.0
      %v688 = vmax.f32 %v653, 0.0
      %v689 = vmax.f32 %v654, 0.0
      %v690 = vmax.f32 %v655, 0.0
      %v691 = vmax.f32 %v656, 0.0
      %v692 = vmax.f32 %v657, 0.0
      %v693 = vmax.f32 %v658, 0.0
      %v694 = vmax.f32 %v659, 0.0
      %vm695 = vcmp.ne.f32.partialorder %v643, %v643
      %vm696 = vcmp.ne.f32.partialorder %v644, %v644
      %vm697 = vcmp.ne.f32.partialorder %v645, %v645
      %vm698 = vcmp.ne.f32.partialorder %v646, %v646
      %vm699 = vcmp.ne.f32.partialorder %v647, %v647
      %vm700 = vcmp.ne.f32.partialorder %v648, %v648
      %vm701 = vcmp.ne.f32.partialorder %v649, %v649
      %vm702 = vcmp.ne.f32.partialorder %v650, %v650
      %vm703 = vcmp.ne.f32.partialorder %v651, %v651
      %vm704 = vcmp.ne.f32.partialorder %v652, %v652
      %vm705 = vcmp.ne.f32.partialorder %v653, %v653
      %vm706 = vcmp.ne.f32.partialorder %v654, %v654
      %vm707 = vcmp.ne.f32.partialorder %v655, %v655
      %vm708 = vcmp.ne.f32.partialorder %v656, %v656
      %vm709 = vcmp.ne.f32.partialorder %v657, %v657
      %vm710 = vcmp.ne.f32.partialorder %v658, %v658
      %vm711 = vcmp.ne.f32.partialorder %v659, %v659
      %v712 = vadd.f32 %v643, 0.0
      %v713 = vadd.f32 %v644, 0.0
      %v714 = vadd.f32 %v645, 0.0
      %v715 = vadd.f32 %v646, 0.0
      %v716 = vadd.f32 %v647, 0.0
      %v717 = vadd.f32 %v648, 0.0
      %v718 = vadd.f32 %v649, 0.0
      %v719 = vadd.f32 %v650, 0.0
      %v720 = vadd.f32 %v651, 0.0
      %v721 = vadd.f32 %v652, 0.0
      %v722 = vadd.f32 %v653, 0.0
      %v723 = vadd.f32 %v654, 0.0
      %v724 = vadd.f32 %v655, 0.0
      %v725 = vadd.f32 %v656, 0.0
      %v726 = vadd.f32 %v657, 0.0
      %v727 = vadd.f32 %v658, 0.0
      %v728 = vadd.f32 %v659, 0.0
      %v729 = vand.u32 2147483647, %v643
      %v730 = vand.u32 2147483647, %v644
      %v731 = vand.u32 2147483647, %v645
      %v732 = vand.u32 2147483647, %v646
      %v733 = vand.u32 2147483647, %v647
      %v734 = vand.u32 2147483647, %v648
      %v735 = vand.u32 2147483647, %v649
      %v736 = vand.u32 2147483647, %v650
      %v737 = vand.u32 2147483647, %v651
      %v738 = vand.u32 2147483647, %v652
      %v739 = vand.u32 2147483647, %v653
      %v740 = vand.u32 2147483647, %v654
      %v741 = vand.u32 2147483647, %v655
      %v742 = vand.u32 2147483647, %v656
      %v743 = vand.u32 2147483647, %v657
      %v744 = vand.u32 2147483647, %v658
      %v745 = vand.u32 2147483647, %v659
      %v746 = vsub.f32 0.0, %v729
      %v747 = vsub.f32 0.0, %v730
      %v748 = vsub.f32 0.0, %v731
      %v749 = vsub.f32 0.0, %v732
      %v750 = vsub.f32 0.0, %v733
      %v751 = vsub.f32 0.0, %v734
      %v752 = vsub.f32 0.0, %v735
      %v753 = vsub.f32 0.0, %v736
      %v754 = vsub.f32 0.0, %v737
      %v755 = vsub.f32 0.0, %v738
      %v756 = vsub.f32 0.0, %v739
      %v757 = vsub.f32 0.0, %v740
      %v758 = vsub.f32 0.0, %v741
      %v759 = vsub.f32 0.0, %v742
      %v760 = vsub.f32 0.0, %v743
      %v761 = vsub.f32 0.0, %v744
      %v762 = vsub.f32 0.0, %v745
      %v763 = vmul.f32 %v746, 1.442695
      %v764 = vpow.pop %v763
      %v765 = vmul.f32 %v747, 1.442695
      %v766 = vpow.pop %v765
      %v767 = vmul.f32 %v748, 1.442695
      %v768 = vpow.pop %v767
      %v769 = vmul.f32 %v749, 1.442695
      %v770 = vpow.pop %v769
      %v771 = vmul.f32 %v750, 1.442695
      %v772 = vpow.pop %v771
      %v773 = vmul.f32 %v751, 1.442695
      %v774 = vpow.pop %v773
      %v775 = vmul.f32 %v752, 1.442695
      %v776 = vpow.pop %v775
      %v777 = vmul.f32 %v753, 1.442695
      %v778 = vpow.pop %v777
      %v779 = vmul.f32 %v754, 1.442695
      %v780 = vpow.pop %v779
      %v781 = vmul.f32 %v755, 1.442695
      %v782 = vpow.pop %v781
      %v783 = vmul.f32 %v756, 1.442695
      %v784 = vpow.pop %v783
      %v785 = vmul.f32 %v757, 1.442695
      %v786 = vpow.pop %v785
      %v787 = vmul.f32 %v758, 1.442695
      %v788 = vpow.pop %v787
      %v789 = vmul.f32 %v759, 1.442695
      %v790 = vpow.pop %v789
      %v791 = vmul.f32 %v760, 1.442695
      %v792 = vpow.pop %v791
      %v793 = vmul.f32 %v761, 1.442695
      %v794 = vpow.pop %v793
      %v795 = vmul.f32 %v762, 1.442695
      %v796 = vpow.pop %v795
      %v797 = vadd.f32 %v764, 1.0
      %v798 = vlog2.pop %v797
      %v799 = vmul.f32 %v798, 0.6931472
      %v800 = vmul.f32 -0.5, %v764
      %v801 = vadd.f32 %v800, 1.0
      %v802 = vmul.f32 %v801, %v764
      %v803 = vand.u32 2147483647, %v764
      %vm804 = vcmp.lt.f32.partialorder %v803, 0.0004427343
      %v805 = vsel %vm804, %v802, %v799
      %v806 = vadd.f32 %v766, 1.0
      %v807 = vlog2.pop %v806
      %v808 = vmul.f32 %v807, 0.6931472
      %v809 = vmul.f32 -0.5, %v766
      %v810 = vadd.f32 %v809, 1.0
      %v811 = vmul.f32 %v810, %v766
      %v812 = vand.u32 2147483647, %v766
      %vm813 = vcmp.lt.f32.partialorder %v812, 0.0004427343
      %v814 = vsel %vm813, %v811, %v808
      %v815 = vadd.f32 %v768, 1.0
      %v816 = vlog2.pop %v815
      %v817 = vmul.f32 %v816, 0.6931472
      %v818 = vmul.f32 -0.5, %v768
      %v819 = vadd.f32 %v818, 1.0
      %v820 = vmul.f32 %v819, %v768
      %v821 = vand.u32 2147483647, %v768
      %vm822 = vcmp.lt.f32.partialorder %v821, 0.0004427343
      %v823 = vsel %vm822, %v820, %v817
      %v824 = vadd.f32 %v770, 1.0
      %v825 = vlog2.pop %v824
      %v826 = vmul.f32 %v825, 0.6931472
      %v827 = vmul.f32 -0.5, %v770
      %v828 = vadd.f32 %v827, 1.0
      %v829 = vmul.f32 %v828, %v770
      %v830 = vand.u32 2147483647, %v770
      %vm831 = vcmp.lt.f32.partialorder %v830, 0.0004427343
      %v832 = vsel %vm831, %v829, %v826
      %v833 = vadd.f32 %v772, 1.0
      %v834 = vlog2.pop %v833
      %v835 = vmul.f32 %v834, 0.6931472
      %v836 = vmul.f32 -0.5, %v772
      %v837 = vadd.f32 %v836, 1.0
      %v838 = vmul.f32 %v837, %v772
      %v839 = vand.u32 2147483647, %v772
      %vm840 = vcmp.lt.f32.partialorder %v839, 0.0004427343
      %v841 = vsel %vm840, %v838, %v835
      %v842 = vadd.f32 %v774, 1.0
      %v843 = vlog2.pop %v842
      %v844 = vmul.f32 %v843, 0.6931472
      %v845 = vmul.f32 -0.5, %v774
      %v846 = vadd.f32 %v845, 1.0
      %v847 = vmul.f32 %v846, %v774
      %v848 = vand.u32 2147483647, %v774
      %vm849 = vcmp.lt.f32.partialorder %v848, 0.0004427343
      %v850 = vsel %vm849, %v847, %v844
      %v851 = vadd.f32 %v776, 1.0
      %v852 = vlog2.pop %v851
      %v853 = vmul.f32 %v852, 0.6931472
      %v854 = vmul.f32 -0.5, %v776
      %v855 = vadd.f32 %v854, 1.0
      %v856 = vmul.f32 %v855, %v776
      %v857 = vand.u32 2147483647, %v776
      %vm858 = vcmp.lt.f32.partialorder %v857, 0.0004427343
      %v859 = vsel %vm858, %v856, %v853
      %v860 = vadd.f32 %v778, 1.0
      %v861 = vlog2.pop %v860
      %v862 = vmul.f32 %v861, 0.6931472
      %v863 = vmul.f32 -0.5, %v778
      %v864 = vadd.f32 %v863, 1.0
      %v865 = vmul.f32 %v864, %v778
      %v866 = vand.u32 2147483647, %v778
      %vm867 = vcmp.lt.f32.partialorder %v866, 0.0004427343
      %v868 = vsel %vm867, %v865, %v862
      %v869 = vadd.f32 %v780, 1.0
      %v870 = vlog2.pop %v869
      %v871 = vmul.f32 %v870, 0.6931472
      %v872 = vmul.f32 -0.5, %v780
      %v873 = vadd.f32 %v872, 1.0
      %v874 = vmul.f32 %v873, %v780
      %v875 = vand.u32 2147483647, %v780
      %vm876 = vcmp.lt.f32.partialorder %v875, 0.0004427343
      %v877 = vsel %vm876, %v874, %v871
      %v878 = vadd.f32 %v782, 1.0
      %v879 = vlog2.pop %v878
      %v880 = vmul.f32 %v879, 0.6931472
      %v881 = vmul.f32 -0.5, %v782
      %v882 = vadd.f32 %v881, 1.0
      %v883 = vmul.f32 %v882, %v782
      %v884 = vand.u32 2147483647, %v782
      %vm885 = vcmp.lt.f32.partialorder %v884, 0.0004427343
      %v886 = vsel %vm885, %v883, %v880
      %v887 = vadd.f32 %v784, 1.0
      %v888 = vlog2.pop %v887
      %v889 = vmul.f32 %v888, 0.6931472
      %v890 = vmul.f32 -0.5, %v784
      %v891 = vadd.f32 %v890, 1.0
      %v892 = vmul.f32 %v891, %v784
      %v893 = vand.u32 2147483647, %v784
      %vm894 = vcmp.lt.f32.partialorder %v893, 0.0004427343
      %v895 = vsel %vm894, %v892, %v889
      %v896 = vadd.f32 %v786, 1.0
      %v897 = vlog2.pop %v896
      %v898 = vmul.f32 %v897, 0.6931472
      %v899 = vmul.f32 -0.5, %v786
      %v900 = vadd.f32 %v899, 1.0
      %v901 = vmul.f32 %v900, %v786
      %v902 = vand.u32 2147483647, %v786
      %vm903 = vcmp.lt.f32.partialorder %v902, 0.0004427343
      %v904 = vsel %vm903, %v901, %v898
      %v905 = vadd.f32 %v788, 1.0
      %v906 = vlog2.pop %v905
      %v907 = vmul.f32 %v906, 0.6931472
      %v908 = vmul.f32 -0.5, %v788
      %v909 = vadd.f32 %v908, 1.0
      %v910 = vmul.f32 %v909, %v788
      %v911 = vand.u32 2147483647, %v788
      %vm912 = vcmp.lt.f32.partialorder %v911, 0.0004427343
      %v913 = vsel %vm912, %v910, %v907
      %v914 = vadd.f32 %v790, 1.0
      %v915 = vlog2.pop %v914
      %v916 = vmul.f32 %v915, 0.6931472
      %v917 = vmul.f32 -0.5, %v790
      %v918 = vadd.f32 %v917, 1.0
      %v919 = vmul.f32 %v918, %v790
      %v920 = vand.u32 2147483647, %v790
      %vm921 = vcmp.lt.f32.partialorder %v920, 0.0004427343
      %v922 = vsel %vm921, %v919, %v916
      %v923 = vadd.f32 %v792, 1.0
      %v924 = vlog2.pop %v923
      %v925 = vmul.f32 %v924, 0.6931472
      %v926 = vmul.f32 -0.5, %v792
      %v927 = vadd.f32 %v926, 1.0
      %v928 = vmul.f32 %v927, %v792
      %v929 = vand.u32 2147483647, %v792
      %vm930 = vcmp.lt.f32.partialorder %v929, 0.0004427343
      %v931 = vsel %vm930, %v928, %v925
      %v932 = vadd.f32 %v794, 1.0
      %v933 = vlog2.pop %v932
      %v934 = vmul.f32 %v933, 0.6931472
      %v935 = vmul.f32 -0.5, %v794
      %v936 = vadd.f32 %v935, 1.0
      %v937 = vmul.f32 %v936, %v794
      %v938 = vand.u32 2147483647, %v794
      %vm939 = vcmp.lt.f32.partialorder %v938, 0.0004427343
      %v940 = vsel %vm939, %v937, %v934
      %v941 = vadd.f32 %v796, 1.0
      %v942 = vlog2.pop %v941
      %v943 = vmul.f32 %v942, 0.6931472
      %v944 = vmul.f32 -0.5, %v796
      %v945 = vadd.f32 %v944, 1.0
      %v946 = vmul.f32 %v945, %v796
      %v947 = vand.u32 2147483647, %v796
      %vm948 = vcmp.lt.f32.partialorder %v947, 0.0004427343
      %v949 = vsel %vm948, %v946, %v943
      %v950 = vadd.f32 %v678, %v805
      %v951 = vadd.f32 %v679, %v814
      %v952 = vadd.f32 %v680, %v823
      %v953 = vadd.f32 %v681, %v832
      %v954 = vadd.f32 %v682, %v841
      %v955 = vadd.f32 %v683, %v850
      %v956 = vadd.f32 %v684, %v859
      %v957 = vadd.f32 %v685, %v868
      %v958 = vadd.f32 %v686, %v877
      %v959 = vadd.f32 %v687, %v886
      %v960 = vadd.f32 %v688, %v895
      %v961 = vadd.f32 %v689, %v904
      %v962 = vadd.f32 %v690, %v913
      %v963 = vadd.f32 %v691, %v922
      %v964 = vadd.f32 %v692, %v931
      %v965 = vadd.f32 %v693, %v940
      %v966 = vadd.f32 %v694, %v949
      %v967 = vsel %vm695, %v712, %v950
      %v968 = vsel %vm696, %v713, %v951
      %v969 = vsel %vm697, %v714, %v952
      %v970 = vsel %vm698, %v715, %v953
      %v971 = vsel %vm699, %v716, %v954
      %v972 = vsel %vm700, %v717, %v955
      %v973 = vsel %vm701, %v718, %v956
      %v974 = vsel %vm702, %v719, %v957
      %v975 = vsel %vm703, %v720, %v958
      %v976 = vsel %vm704, %v721, %v959
      %v977 = vsel %vm705, %v722, %v960
      %v978 = vsel %vm706, %v723, %v961
      %v979 = vsel %vm707, %v724, %v962
      %v980 = vsel %vm708, %v725, %v963
      %v981 = vsel %vm709, %v726, %v964
      %v982 = vsel %vm710, %v727, %v965
      %v983 = vsel %vm711, %v728, %v966
      %v984 = vmul.f32 %v967, %v661
      %v985 = vmul.f32 %v968, %v662
      %v986 = vmul.f32 %v969, %v663
      %v987 = vmul.f32 %v970, %v664
      %v988 = vmul.f32 %v971, %v665
      %v989 = vmul.f32 %v972, %v666
      %v990 = vmul.f32 %v973, %v667
      %v991 = vmul.f32 %v974, %v668
      %v992 = vmul.f32 %v975, %v669
      %v993 = vmul.f32 %v976, %v670
      %v994 = vmul.f32 %v977, %v671
      %v995 = vmul.f32 %v978, %v672
      %v996 = vmul.f32 %v979, %v673
      %v997 = vmul.f32 %v980, %v674
      %v998 = vmul.f32 %v981, %v675
      %v999 = vmul.f32 %v982, %v676
      %v1000 = vmul.f32 %v983, %v677
      %v1001 = vadd.f32 %v625, %v984
      %v1002 = vadd.f32 %v626, %v985
      %v1003 = vadd.f32 %v627, %v986
      %v1004 = vadd.f32 %v628, %v987
      %v1005 = vadd.f32 %v629, %v988
      %v1006 = vadd.f32 %v630, %v989
      %v1007 = vadd.f32 %v631, %v990
      %v1008 = vadd.f32 %v632, %v991
      %v1009 = vadd.f32 %v633, %v992
      %v1010 = vadd.f32 %v634, %v993
      %v1011 = vadd.f32 %v635, %v994
      %v1012 = vadd.f32 %v636, %v995
      %v1013 = vadd.f32 %v637, %v996
      %v1014 = vadd.f32 %v638, %v997
      %v1015 = vadd.f32 %v639, %v998
      %v1016 = vadd.f32 %v640, %v999
      %v1017 = vadd.f32 %v641, %v1000
      %v1018 = vmul.f32 %v967, %v967
      %v1019 = vmul.f32 %v968, %v968
      %v1020 = vmul.f32 %v969, %v969
      %v1021 = vmul.f32 %v970, %v970
      %v1022 = vmul.f32 %v971, %v971
      %v1023 = vmul.f32 %v972, %v972
      %v1024 = vmul.f32 %v973, %v973
      %v1025 = vmul.f32 %v974, %v974
      %v1026 = vmul.f32 %v975, %v975
      %v1027 = vmul.f32 %v976, %v976
      %v1028 = vmul.f32 %v977, %v977
      %v1029 = vmul.f32 %v978, %v978
      %v1030 = vmul.f32 %v979, %v979
      %v1031 = vmul.f32 %v980, %v980
      %v1032 = vmul.f32 %v981, %v981
      %v1033 = vmul.f32 %v982, %v982
      %v1034 = vmul.f32 %v983, %v983
      %v1035 = vrcp.pop %v1018
      %v1036 = vrcp.pop %v1019
      %v1037 = vrcp.pop %v1020
      %v1038 = vrcp.pop %v1021
      %v1039 = vrcp.pop %v1022
      %v1040 = vrcp.pop %v1023
      %v1041 = vrcp.pop %v1024
      %v1042 = vrcp.pop %v1025
      %v1043 = vrcp.pop %v1026
      %v1044 = vrcp.pop %v1027
      %v1045 = vrcp.pop %v1028
      %v1046 = vrcp.pop %v1029
      %v1047 = vrcp.pop %v1030
      %v1048 = vrcp.pop %v1031
      %v1049 = vrcp.pop %v1032
      %v1050 = vrcp.pop %v1033
      %v1051 = vrcp.pop %v1034
      %v1052 = vmul.f32 %v1035, 0.5
      %v1053 = vmul.f32 %v1036, 0.5
      %v1054 = vmul.f32 %v1037, 0.5
      %v1055 = vmul.f32 %v1038, 0.5
      %v1056 = vmul.f32 %v1039, 0.5
      %v1057 = vmul.f32 %v1040, 0.5
      %v1058 = vmul.f32 %v1041, 0.5
      %v1059 = vmul.f32 %v1042, 0.5
      %v1060 = vmul.f32 %v1043, 0.5
      %v1061 = vmul.f32 %v1044, 0.5
      %v1062 = vmul.f32 %v1045, 0.5
      %v1063 = vmul.f32 %v1046, 0.5
      %v1064 = vmul.f32 %v1047, 0.5
      %v1065 = vmul.f32 %v1048, 0.5
      %v1066 = vmul.f32 %v1049, 0.5
      %v1067 = vmul.f32 %v1050, 0.5
      %v1068 = vmul.f32 %v1051, 0.5
      %v1069 = vlog2.pop %v967
      %v1070 = vmul.f32 %v1069, 0.6931472
      %v1071 = vlog2.pop %v968
      %v1072 = vmul.f32 %v1071, 0.6931472
      %v1073 = vlog2.pop %v969
      %v1074 = vmul.f32 %v1073, 0.6931472
      %v1075 = vlog2.pop %v970
      %v1076 = vmul.f32 %v1075, 0.6931472
      %v1077 = vlog2.pop %v971
      %v1078 = vmul.f32 %v1077, 0.6931472
      %v1079 = vlog2.pop %v972
      %v1080 = vmul.f32 %v1079, 0.6931472
      %v1081 = vlog2.pop %v973
      %v1082 = vmul.f32 %v1081, 0.6931472
      %v1083 = vlog2.pop %v974
      %v1084 = vmul.f32 %v1083, 0.6931472
      %v1085 = vlog2.pop %v975
      %v1086 = vmul.f32 %v1085, 0.6931472
      %v1087 = vlog2.pop %v976
      %v1088 = vmul.f32 %v1087, 0.6931472
      %v1089 = vlog2.pop %v977
      %v1090 = vmul.f32 %v1089, 0.6931472
      %v1091 = vlog2.pop %v978
      %v1092 = vmul.f32 %v1091, 0.6931472
      %v1093 = vlog2.pop %v979
      %v1094 = vmul.f32 %v1093, 0.6931472
      %v1095 = vlog2.pop %v980
      %v1096 = vmul.f32 %v1095, 0.6931472
      %v1097 = vlog2.pop %v981
      %v1098 = vmul.f32 %v1097, 0.6931472
      %v1099 = vlog2.pop %v982
      %v1100 = vmul.f32 %v1099, 0.6931472
      %v1101 = vlog2.pop %v983
      %v1102 = vmul.f32 %v1101, 0.6931472
      %v1103 = vmul.f32 %v1001, %v1001
      %v1104 = vmul.f32 %v1002, %v1002
      %v1105 = vmul.f32 %v1003, %v1003
      %v1106 = vmul.f32 %v1004, %v1004
      %v1107 = vmul.f32 %v1005, %v1005
      %v1108 = vmul.f32 %v1006, %v1006
      %v1109 = vmul.f32 %v1007, %v1007
      %v1110 = vmul.f32 %v1008, %v1008
      %v1111 = vmul.f32 %v1009, %v1009
      %v1112 = vmul.f32 %v1010, %v1010
      %v1113 = vmul.f32 %v1011, %v1011
      %v1114 = vmul.f32 %v1012, %v1012
      %v1115 = vmul.f32 %v1013, %v1013
      %v1116 = vmul.f32 %v1014, %v1014
      %v1117 = vmul.f32 %v1015, %v1015
      %v1118 = vmul.f32 %v1016, %v1016
      %v1119 = vmul.f32 %v1017, %v1017
      %v1120 = vadd.f32 %v1103, 1.0
      %v1121 = vadd.f32 %v1104, 1.0
      %v1122 = vadd.f32 %v1105, 1.0
      %v1123 = vadd.f32 %v1106, 1.0
      %v1124 = vadd.f32 %v1107, 1.0
      %v1125 = vadd.f32 %v1108, 1.0
      %v1126 = vadd.f32 %v1109, 1.0
      %v1127 = vadd.f32 %v1110, 1.0
      %v1128 = vadd.f32 %v1111, 1.0
      %v1129 = vadd.f32 %v1112, 1.0
      %v1130 = vadd.f32 %v1113, 1.0
      %v1131 = vadd.f32 %v1114, 1.0
      %v1132 = vadd.f32 %v1115, 1.0
      %v1133 = vadd.f32 %v1116, 1.0
      %v1134 = vadd.f32 %v1117, 1.0
      %v1135 = vadd.f32 %v1118, 1.0
      %v1136 = vadd.f32 %v1119, 1.0
      %v1137 = vmul.f32 %v1120, %v1052
      %v1138 = vmul.f32 %v1121, %v1053
      %v1139 = vmul.f32 %v1122, %v1054
      %v1140 = vmul.f32 %v1123, %v1055
      %v1141 = vmul.f32 %v1124, %v1056
      %v1142 = vmul.f32 %v1125, %v1057
      %v1143 = vmul.f32 %v1126, %v1058
      %v1144 = vmul.f32 %v1127, %v1059
      %v1145 = vmul.f32 %v1128, %v1060
      %v1146 = vmul.f32 %v1129, %v1061
      %v1147 = vmul.f32 %v1130, %v1062
      %v1148 = vmul.f32 %v1131, %v1063
      %v1149 = vmul.f32 %v1132, %v1064
      %v1150 = vmul.f32 %v1133, %v1065
      %v1151 = vmul.f32 %v1134, %v1066
      %v1152 = vmul.f32 %v1135, %v1067
      %v1153 = vmul.f32 %v1136, %v1068
      %v1154 = vadd.f32 %v1070, %v1137
      %v1155 = vadd.f32 %v1072, %v1138
      %v1156 = vadd.f32 %v1074, %v1139
      %v1157 = vadd.f32 %v1076, %v1140
      %v1158 = vadd.f32 %v1078, %v1141
      %v1159 = vadd.f32 %v1080, %v1142
      %v1160 = vadd.f32 %v1082, %v1143
      %v1161 = vadd.f32 %v1084, %v1144
      %v1162 = vadd.f32 %v1086, %v1145
      %v1163 = vadd.f32 %v1088, %v1146
      %v1164 = vadd.f32 %v1090, %v1147
      %v1165 = vadd.f32 %v1092, %v1148
      %v1166 = vadd.f32 %v1094, %v1149
      %v1167 = vadd.f32 %v1096, %v1150
      %v1168 = vadd.f32 %v1098, %v1151
      %v1169 = vadd.f32 %v1100, %v1152
      %v1170 = vadd.f32 %v1102, %v1153
      %v1171 = vsub.f32 %v1154, 0.5
      %v1172 = vsub.f32 %v1155, 0.5
      %v1173 = vsub.f32 %v1156, 0.5
      %v1174 = vsub.f32 %v1157, 0.5
      %v1175 = vsub.f32 %v1158, 0.5
      %v1176 = vsub.f32 %v1159, 0.5
      %v1177 = vsub.f32 %v1160, 0.5
      %v1178 = vsub.f32 %v1161, 0.5
      %v1179 = vsub.f32 %v1162, 0.5
      %v1180 = vsub.f32 %v1163, 0.5
      %v1181 = vsub.f32 %v1164, 0.5
      %v1182 = vsub.f32 %v1165, 0.5
      %v1183 = vsub.f32 %v1166, 0.5
      %v1184 = vsub.f32 %v1167, 0.5
      %v1185 = vsub.f32 %v1168, 0.5
      %v1186 = vsub.f32 %v1169, 0.5
      %v1187 = vsub.f32 %v1170, 0.5
      %v1188 = vadd.f32 %v1171, %v1172
      %v1189 = vadd.f32 %v1188, %v1173
      %v1190 = vadd.f32 %v1189, %v1174
      %v1191 = vadd.f32 %v1190, %v1175
      %v1192 = vadd.f32 %v1191, %v1176
      %v1193 = vadd.f32 %v1192, %v1177
      %v1194 = vadd.f32 %v1193, %v1178
      %v1195 = vadd.f32 %v1194, %v1179
      %v1196 = vadd.f32 %v1195, %v1180
      %v1197 = vadd.f32 %v1196, %v1181
      %v1198 = vadd.f32 %v1197, %v1182
      %v1199 = vadd.f32 %v1198, %v1183
      %v1200 = vadd.f32 %v1199, %v1184
      %v1201 = vadd.f32 %v1200, %v1185
      %v1202 = vadd.f32 %v1201, %v1186
      %v1203 = vadd.f32 %v1202, %v1187
      %1204 = vadd.xlane.f32.xlu0 %v1203
      %v1205 = vpop.xlane.xlu0 %1204
      %v1206 = vrot.slane %v1205, 4
      %v1207 = vadd.f32 %v1205, %v1206
      %v1208 = vrot.slane %v1207, 2
      %v1209 = vadd.f32 %v1207, %v1208
      %v1210 = vrot.slane %v1209, 1
      %v1211 = vadd.f32 %v1209, %v1210
      %s1212 = vtos %v1211
      %s1213 = sadd.f32 %s606, %s1212
      %s1214 = scalar_lea.vmem [#allocation2], 136
      %1215 = vst [vmem:[%s1214] sm:$0xff] %v1001
      %1216 = vst [vmem:[%s1214 + $0x8] sm:$0xff] %v1002
      %1217 = vst [vmem:[%s1214 + $0x10] sm:$0xff] %v1003
      %1218 = vst [vmem:[%s1214 + $0x18] sm:$0xff] %v1004
      %1219 = vst [vmem:[%s1214 + $0x20] sm:$0xff] %v1005
      %1220 = vst [vmem:[%s1214 + $0x28] sm:$0xff] %v1006
      %1221 = vst [vmem:[%s1214 + $0x30] sm:$0xff] %v1007
      %1222 = vst [vmem:[%s1214 + $0x38] sm:$0xff] %v1008
      %1223 = vst [vmem:[%s1214 + $0x40] sm:$0xff] %v1009
      %1224 = vst [vmem:[%s1214 + $0x48] sm:$0xff] %v1010
      %1225 = vst [vmem:[%s1214 + $0x50] sm:$0xff] %v1011
      %1226 = vst [vmem:[%s1214 + $0x58] sm:$0xff] %v1012
      %1227 = vst [vmem:[%s1214 + $0x60] sm:$0xff] %v1013
      %1228 = vst [vmem:[%s1214 + $0x68] sm:$0xff] %v1014
      %1229 = vst [vmem:[%s1214 + $0x70] sm:$0xff] %v1015
      %1230 = vst [vmem:[%s1214 + $0x78] sm:$0xff] %v1016
      %1231 = vst [vmem:[%s1214 + $0x80] sm:$0xff] %v1017
      %s1232 = scalar_lea.vmem %s1, 816
      %v1233 = vld [vmem:[%s1232] sm:$0xff]
      %v1234 = vld [vmem:[%s1232 + $0x8] sm:$0xff]
      %v1235 = vld [vmem:[%s1232 + $0x10] sm:$0xff]
      %v1236 = vld [vmem:[%s1232 + $0x18] sm:$0xff]
      %v1237 = vld [vmem:[%s1232 + $0x20] sm:$0xff]
      %v1238 = vld [vmem:[%s1232 + $0x28] sm:$0xff]
      %v1239 = vld [vmem:[%s1232 + $0x30] sm:$0xff]
      %v1240 = vld [vmem:[%s1232 + $0x38] sm:$0xff]
      %v1241 = vld [vmem:[%s1232 + $0x40] sm:$0xff]
      %v1242 = vld [vmem:[%s1232 + $0x48] sm:$0xff]
      %v1243 = vld [vmem:[%s1232 + $0x50] sm:$0xff]
      %v1244 = vld [vmem:[%s1232 + $0x58] sm:$0xff]
      %v1245 = vld [vmem:[%s1232 + $0x60] sm:$0xff]
      %v1246 = vld [vmem:[%s1232 + $0x68] sm:$0xff]
      %v1247 = vld [vmem:[%s1232 + $0x70] sm:$0xff]
      %v1248 = vld [vmem:[%s1232 + $0x78] sm:$0xff]
      %v1249 = vld [vmem:[%s1232 + $0x80] sm:$0xff]
      %s1250 = scalar_lea.vmem %s1, 952
      %v1251 = vld [vmem:[%s1250] sm:$0xff]
      %v1252 = vld [vmem:[%s1250 + $0x8] sm:$0xff]
      %v1253 = vld [vmem:[%s1250 + $0x10] sm:$0xff]
      %v1254 = vld [vmem:[%s1250 + $0x18] sm:$0xff]
      %v1255 = vld [vmem:[%s1250 + $0x20] sm:$0xff]
      %v1256 = vld [vmem:[%s1250 + $0x28] sm:$0xff]
      %v1257 = vld [vmem:[%s1250 + $0x30] sm:$0xff]
      %v1258 = vld [vmem:[%s1250 + $0x38] sm:$0xff]
      %v1259 = vld [vmem:[%s1250 + $0x40] sm:$0xff]
      %v1260 = vld [vmem:[%s1250 + $0x48] sm:$0xff]
      %v1261 = vld [vmem:[%s1250 + $0x50] sm:$0xff]
      %v1262 = vld [vmem:[%s1250 + $0x58] sm:$0xff]
      %v1263 = vld [vmem:[%s1250 + $0x60] sm:$0xff]
      %v1264 = vld [vmem:[%s1250 + $0x68] sm:$0xff]
      %v1265 = vld [vmem:[%s1250 + $0x70] sm:$0xff]
      %v1266 = vld [vmem:[%s1250 + $0x78] sm:$0xff]
      %v1267 = vld [vmem:[%s1250 + $0x80] sm:$0xff]
      %s1268 = scalar_lea.vmem %s1, 1088
      %v1269 = vld [vmem:[%s1268] sm:$0xff]
      %v1270 = vld [vmem:[%s1268 + $0x8] sm:$0xff]
      %v1271 = vld [vmem:[%s1268 + $0x10] sm:$0xff]
      %v1272 = vld [vmem:[%s1268 + $0x18] sm:$0xff]
      %v1273 = vld [vmem:[%s1268 + $0x20] sm:$0xff]
      %v1274 = vld [vmem:[%s1268 + $0x28] sm:$0xff]
      %v1275 = vld [vmem:[%s1268 + $0x30] sm:$0xff]
      %v1276 = vld [vmem:[%s1268 + $0x38] sm:$0xff]
      %v1277 = vld [vmem:[%s1268 + $0x40] sm:$0xff]
      %v1278 = vld [vmem:[%s1268 + $0x48] sm:$0xff]
      %v1279 = vld [vmem:[%s1268 + $0x50] sm:$0xff]
      %v1280 = vld [vmem:[%s1268 + $0x58] sm:$0xff]
      %v1281 = vld [vmem:[%s1268 + $0x60] sm:$0xff]
      %v1282 = vld [vmem:[%s1268 + $0x68] sm:$0xff]
      %v1283 = vld [vmem:[%s1268 + $0x70] sm:$0xff]
      %v1284 = vld [vmem:[%s1268 + $0x78] sm:$0xff]
      %v1285 = vld [vmem:[%s1268 + $0x80] sm:$0xff]
      %v1286 = vmax.f32 %v1251, 0.0
      %v1287 = vmax.f32 %v1252, 0.0
      %v1288 = vmax.f32 %v1253, 0.0
      %v1289 = vmax.f32 %v1254, 0.0
      %v1290 = vmax.f32 %v1255, 0.0
      %v1291 = vmax.f32 %v1256, 0.0
      %v1292 = vmax.f32 %v1257, 0.0
      %v1293 = vmax.f32 %v1258, 0.0
      %v1294 = vmax.f32 %v1259, 0.0
      %v1295 = vmax.f32 %v1260, 0.0
      %v1296 = vmax.f32 %v1261, 0.0
      %v1297 = vmax.f32 %v1262, 0.0
      %v1298 = vmax.f32 %v1263, 0.0
      %v1299 = vmax.f32 %v1264, 0.0
      %v1300 = vmax.f32 %v1265, 0.0
      %v1301 = vmax.f32 %v1266, 0.0
      %v1302 = vmax.f32 %v1267, 0.0
      %vm1303 = vcmp.ne.f32.partialorder %v1251, %v1251
      %vm1304 = vcmp.ne.f32.partialorder %v1252, %v1252
      %vm1305 = vcmp.ne.f32.partialorder %v1253, %v1253
      %vm1306 = vcmp.ne.f32.partialorder %v1254, %v1254
      %vm1307 = vcmp.ne.f32.partialorder %v1255, %v1255
      %vm1308 = vcmp.ne.f32.partialorder %v1256, %v1256
      %vm1309 = vcmp.ne.f32.partialorder %v1257, %v1257
      %vm1310 = vcmp.ne.f32.partialorder %v1258, %v1258
      %vm1311 = vcmp.ne.f32.partialorder %v1259, %v1259
      %vm1312 = vcmp.ne.f32.partialorder %v1260, %v1260
      %vm1313 = vcmp.ne.f32.partialorder %v1261, %v1261
      %vm1314 = vcmp.ne.f32.partialorder %v1262, %v1262
      %vm1315 = vcmp.ne.f32.partialorder %v1263, %v1263
      %vm1316 = vcmp.ne.f32.partialorder %v1264, %v1264
      %vm1317 = vcmp.ne.f32.partialorder %v1265, %v1265
      %vm1318 = vcmp.ne.f32.partialorder %v1266, %v1266
      %vm1319 = vcmp.ne.f32.partialorder %v1267, %v1267
      %v1320 = vadd.f32 %v1251, 0.0
      %v1321 = vadd.f32 %v1252, 0.0
      %v1322 = vadd.f32 %v1253, 0.0
      %v1323 = vadd.f32 %v1254, 0.0
      %v1324 = vadd.f32 %v1255, 0.0
      %v1325 = vadd.f32 %v1256, 0.0
      %v1326 = vadd.f32 %v1257, 0.0
      %v1327 = vadd.f32 %v1258, 0.0
      %v1328 = vadd.f32 %v1259, 0.0
      %v1329 = vadd.f32 %v1260, 0.0
      %v1330 = vadd.f32 %v1261, 0.0
      %v1331 = vadd.f32 %v1262, 0.0
      %v1332 = vadd.f32 %v1263, 0.0
      %v1333 = vadd.f32 %v1264, 0.0
      %v1334 = vadd.f32 %v1265, 0.0
      %v1335 = vadd.f32 %v1266, 0.0
      %v1336 = vadd.f32 %v1267, 0.0
      %v1337 = vand.u32 2147483647, %v1251
      %v1338 = vand.u32 2147483647, %v1252
      %v1339 = vand.u32 2147483647, %v1253
      %v1340 = vand.u32 2147483647, %v1254
      %v1341 = vand.u32 2147483647, %v1255
      %v1342 = vand.u32 2147483647, %v1256
      %v1343 = vand.u32 2147483647, %v1257
      %v1344 = vand.u32 2147483647, %v1258
      %v1345 = vand.u32 2147483647, %v1259
      %v1346 = vand.u32 2147483647, %v1260
      %v1347 = vand.u32 2147483647, %v1261
      %v1348 = vand.u32 2147483647, %v1262
      %v1349 = vand.u32 2147483647, %v1263
      %v1350 = vand.u32 2147483647, %v1264
      %v1351 = vand.u32 2147483647, %v1265
      %v1352 = vand.u32 2147483647, %v1266
      %v1353 = vand.u32 2147483647, %v1267
      %v1354 = vsub.f32 0.0, %v1337
      %v1355 = vsub.f32 0.0, %v1338
      %v1356 = vsub.f32 0.0, %v1339
      %v1357 = vsub.f32 0.0, %v1340
      %v1358 = vsub.f32 0.0, %v1341
      %v1359 = vsub.f32 0.0, %v1342
      %v1360 = vsub.f32 0.0, %v1343
      %v1361 = vsub.f32 0.0, %v1344
      %v1362 = vsub.f32 0.0, %v1345
      %v1363 = vsub.f32 0.0, %v1346
      %v1364 = vsub.f32 0.0, %v1347
      %v1365 = vsub.f32 0.0, %v1348
      %v1366 = vsub.f32 0.0, %v1349
      %v1367 = vsub.f32 0.0, %v1350
      %v1368 = vsub.f32 0.0, %v1351
      %v1369 = vsub.f32 0.0, %v1352
      %v1370 = vsub.f32 0.0, %v1353
      %v1371 = vmul.f32 %v1354, 1.442695
      %v1372 = vpow.pop %v1371
      %v1373 = vmul.f32 %v1355, 1.442695
      %v1374 = vpow.pop %v1373
      %v1375 = vmul.f32 %v1356, 1.442695
      %v1376 = vpow.pop %v1375
      %v1377 = vmul.f32 %v1357, 1.442695
      %v1378 = vpow.pop %v1377
      %v1379 = vmul.f32 %v1358, 1.442695
      %v1380 = vpow.pop %v1379
      %v1381 = vmul.f32 %v1359, 1.442695
      %v1382 = vpow.pop %v1381
      %v1383 = vmul.f32 %v1360, 1.442695
      %v1384 = vpow.pop %v1383
      %v1385 = vmul.f32 %v1361, 1.442695
      %v1386 = vpow.pop %v1385
      %v1387 = vmul.f32 %v1362, 1.442695
      %v1388 = vpow.pop %v1387
      %v1389 = vmul.f32 %v1363, 1.442695
      %v1390 = vpow.pop %v1389
      %v1391 = vmul.f32 %v1364, 1.442695
      %v1392 = vpow.pop %v1391
      %v1393 = vmul.f32 %v1365, 1.442695
      %v1394 = vpow.pop %v1393
      %v1395 = vmul.f32 %v1366, 1.442695
      %v1396 = vpow.pop %v1395
      %v1397 = vmul.f32 %v1367, 1.442695
      %v1398 = vpow.pop %v1397
      %v1399 = vmul.f32 %v1368, 1.442695
      %v1400 = vpow.pop %v1399
      %v1401 = vmul.f32 %v1369, 1.442695
      %v1402 = vpow.pop %v1401
      %v1403 = vmul.f32 %v1370, 1.442695
      %v1404 = vpow.pop %v1403
      %v1405 = vadd.f32 %v1372, 1.0
      %v1406 = vlog2.pop %v1405
      %v1407 = vmul.f32 %v1406, 0.6931472
      %v1408 = vmul.f32 -0.5, %v1372
      %v1409 = vadd.f32 %v1408, 1.0
      %v1410 = vmul.f32 %v1409, %v1372
      %v1411 = vand.u32 2147483647, %v1372
      %vm1412 = vcmp.lt.f32.partialorder %v1411, 0.0004427343
      %v1413 = vsel %vm1412, %v1410, %v1407
      %v1414 = vadd.f32 %v1374, 1.0
      %v1415 = vlog2.pop %v1414
      %v1416 = vmul.f32 %v1415, 0.6931472
      %v1417 = vmul.f32 -0.5, %v1374
      %v1418 = vadd.f32 %v1417, 1.0
      %v1419 = vmul.f32 %v1418, %v1374
      %v1420 = vand.u32 2147483647, %v1374
      %vm1421 = vcmp.lt.f32.partialorder %v1420, 0.0004427343
      %v1422 = vsel %vm1421, %v1419, %v1416
      %v1423 = vadd.f32 %v1376, 1.0
      %v1424 = vlog2.pop %v1423
      %v1425 = vmul.f32 %v1424, 0.6931472
      %v1426 = vmul.f32 -0.5, %v1376
      %v1427 = vadd.f32 %v1426, 1.0
      %v1428 = vmul.f32 %v1427, %v1376
      %v1429 = vand.u32 2147483647, %v1376
      %vm1430 = vcmp.lt.f32.partialorder %v1429, 0.0004427343
      %v1431 = vsel %vm1430, %v1428, %v1425
      %v1432 = vadd.f32 %v1378, 1.0
      %v1433 = vlog2.pop %v1432
      %v1434 = vmul.f32 %v1433, 0.6931472
      %v1435 = vmul.f32 -0.5, %v1378
      %v1436 = vadd.f32 %v1435, 1.0
      %v1437 = vmul.f32 %v1436, %v1378
      %v1438 = vand.u32 2147483647, %v1378
      %vm1439 = vcmp.lt.f32.partialorder %v1438, 0.0004427343
      %v1440 = vsel %vm1439, %v1437, %v1434
      %v1441 = vadd.f32 %v1380, 1.0
      %v1442 = vlog2.pop %v1441
      %v1443 = vmul.f32 %v1442, 0.6931472
      %v1444 = vmul.f32 -0.5, %v1380
      %v1445 = vadd.f32 %v1444, 1.0
      %v1446 = vmul.f32 %v1445, %v1380
      %v1447 = vand.u32 2147483647, %v1380
      %vm1448 = vcmp.lt.f32.partialorder %v1447, 0.0004427343
      %v1449 = vsel %vm1448, %v1446, %v1443
      %v1450 = vadd.f32 %v1382, 1.0
      %v1451 = vlog2.pop %v1450
      %v1452 = vmul.f32 %v1451, 0.6931472
      %v1453 = vmul.f32 -0.5, %v1382
      %v1454 = vadd.f32 %v1453, 1.0
      %v1455 = vmul.f32 %v1454, %v1382
      %v1456 = vand.u32 2147483647, %v1382
      %vm1457 = vcmp.lt.f32.partialorder %v1456, 0.0004427343
      %v1458 = vsel %vm1457, %v1455, %v1452
      %v1459 = vadd.f32 %v1384, 1.0
      %v1460 = vlog2.pop %v1459
      %v1461 = vmul.f32 %v1460, 0.6931472
      %v1462 = vmul.f32 -0.5, %v1384
      %v1463 = vadd.f32 %v1462, 1.0
      %v1464 = vmul.f32 %v1463, %v1384
      %v1465 = vand.u32 2147483647, %v1384
      %vm1466 = vcmp.lt.f32.partialorder %v1465, 0.0004427343
      %v1467 = vsel %vm1466, %v1464, %v1461
      %v1468 = vadd.f32 %v1386, 1.0
      %v1469 = vlog2.pop %v1468
      %v1470 = vmul.f32 %v1469, 0.6931472
      %v1471 = vmul.f32 -0.5, %v1386
      %v1472 = vadd.f32 %v1471, 1.0
      %v1473 = vmul.f32 %v1472, %v1386
      %v1474 = vand.u32 2147483647, %v1386
      %vm1475 = vcmp.lt.f32.partialorder %v1474, 0.0004427343
      %v1476 = vsel %vm1475, %v1473, %v1470
      %v1477 = vadd.f32 %v1388, 1.0
      %v1478 = vlog2.pop %v1477
      %v1479 = vmul.f32 %v1478, 0.6931472
      %v1480 = vmul.f32 -0.5, %v1388
      %v1481 = vadd.f32 %v1480, 1.0
      %v1482 = vmul.f32 %v1481, %v1388
      %v1483 = vand.u32 2147483647, %v1388
      %vm1484 = vcmp.lt.f32.partialorder %v1483, 0.0004427343
      %v1485 = vsel %vm1484, %v1482, %v1479
      %v1486 = vadd.f32 %v1390, 1.0
      %v1487 = vlog2.pop %v1486
      %v1488 = vmul.f32 %v1487, 0.6931472
      %v1489 = vmul.f32 -0.5, %v1390
      %v1490 = vadd.f32 %v1489, 1.0
      %v1491 = vmul.f32 %v1490, %v1390
      %v1492 = vand.u32 2147483647, %v1390
      %vm1493 = vcmp.lt.f32.partialorder %v1492, 0.0004427343
      %v1494 = vsel %vm1493, %v1491, %v1488
      %v1495 = vadd.f32 %v1392, 1.0
      %v1496 = vlog2.pop %v1495
      %v1497 = vmul.f32 %v1496, 0.6931472
      %v1498 = vmul.f32 -0.5, %v1392
      %v1499 = vadd.f32 %v1498, 1.0
      %v1500 = vmul.f32 %v1499, %v1392
      %v1501 = vand.u32 2147483647, %v1392
      %vm1502 = vcmp.lt.f32.partialorder %v1501, 0.0004427343
      %v1503 = vsel %vm1502, %v1500, %v1497
      %v1504 = vadd.f32 %v1394, 1.0
      %v1505 = vlog2.pop %v1504
      %v1506 = vmul.f32 %v1505, 0.6931472
      %v1507 = vmul.f32 -0.5, %v1394
      %v1508 = vadd.f32 %v1507, 1.0
      %v1509 = vmul.f32 %v1508, %v1394
      %v1510 = vand.u32 2147483647, %v1394
      %vm1511 = vcmp.lt.f32.partialorder %v1510, 0.0004427343
      %v1512 = vsel %vm1511, %v1509, %v1506
      %v1513 = vadd.f32 %v1396, 1.0
      %v1514 = vlog2.pop %v1513
      %v1515 = vmul.f32 %v1514, 0.6931472
      %v1516 = vmul.f32 -0.5, %v1396
      %v1517 = vadd.f32 %v1516, 1.0
      %v1518 = vmul.f32 %v1517, %v1396
      %v1519 = vand.u32 2147483647, %v1396
      %vm1520 = vcmp.lt.f32.partialorder %v1519, 0.0004427343
      %v1521 = vsel %vm1520, %v1518, %v1515
      %v1522 = vadd.f32 %v1398, 1.0
      %v1523 = vlog2.pop %v1522
      %v1524 = vmul.f32 %v1523, 0.6931472
      %v1525 = vmul.f32 -0.5, %v1398
      %v1526 = vadd.f32 %v1525, 1.0
      %v1527 = vmul.f32 %v1526, %v1398
      %v1528 = vand.u32 2147483647, %v1398
      %vm1529 = vcmp.lt.f32.partialorder %v1528, 0.0004427343
      %v1530 = vsel %vm1529, %v1527, %v1524
      %v1531 = vadd.f32 %v1400, 1.0
      %v1532 = vlog2.pop %v1531
      %v1533 = vmul.f32 %v1532, 0.6931472
      %v1534 = vmul.f32 -0.5, %v1400
      %v1535 = vadd.f32 %v1534, 1.0
      %v1536 = vmul.f32 %v1535, %v1400
      %v1537 = vand.u32 2147483647, %v1400
      %vm1538 = vcmp.lt.f32.partialorder %v1537, 0.0004427343
      %v1539 = vsel %vm1538, %v1536, %v1533
      %v1540 = vadd.f32 %v1402, 1.0
      %v1541 = vlog2.pop %v1540
      %v1542 = vmul.f32 %v1541, 0.6931472
      %v1543 = vmul.f32 -0.5, %v1402
      %v1544 = vadd.f32 %v1543, 1.0
      %v1545 = vmul.f32 %v1544, %v1402
      %v1546 = vand.u32 2147483647, %v1402
      %vm1547 = vcmp.lt.f32.partialorder %v1546, 0.0004427343
      %v1548 = vsel %vm1547, %v1545, %v1542
      %v1549 = vadd.f32 %v1404, 1.0
      %v1550 = vlog2.pop %v1549
      %v1551 = vmul.f32 %v1550, 0.6931472
      %v1552 = vmul.f32 -0.5, %v1404
      %v1553 = vadd.f32 %v1552, 1.0
      %v1554 = vmul.f32 %v1553, %v1404
      %v1555 = vand.u32 2147483647, %v1404
      %vm1556 = vcmp.lt.f32.partialorder %v1555, 0.0004427343
      %v1557 = vsel %vm1556, %v1554, %v1551
      %v1558 = vadd.f32 %v1286, %v1413
      %v1559 = vadd.f32 %v1287, %v1422
      %v1560 = vadd.f32 %v1288, %v1431
      %v1561 = vadd.f32 %v1289, %v1440
      %v1562 = vadd.f32 %v1290, %v1449
      %v1563 = vadd.f32 %v1291, %v1458
      %v1564 = vadd.f32 %v1292, %v1467
      %v1565 = vadd.f32 %v1293, %v1476
      %v1566 = vadd.f32 %v1294, %v1485
      %v1567 = vadd.f32 %v1295, %v1494
      %v1568 = vadd.f32 %v1296, %v1503
      %v1569 = vadd.f32 %v1297, %v1512
      %v1570 = vadd.f32 %v1298, %v1521
      %v1571 = vadd.f32 %v1299, %v1530
      %v1572 = vadd.f32 %v1300, %v1539
      %v1573 = vadd.f32 %v1301, %v1548
      %v1574 = vadd.f32 %v1302, %v1557
      %v1575 = vsel %vm1303, %v1320, %v1558
      %v1576 = vsel %vm1304, %v1321, %v1559
      %v1577 = vsel %vm1305, %v1322, %v1560
      %v1578 = vsel %vm1306, %v1323, %v1561
      %v1579 = vsel %vm1307, %v1324, %v1562
      %v1580 = vsel %vm1308, %v1325, %v1563
      %v1581 = vsel %vm1309, %v1326, %v1564
      %v1582 = vsel %vm1310, %v1327, %v1565
      %v1583 = vsel %vm1311, %v1328, %v1566
      %v1584 = vsel %vm1312, %v1329, %v1567
      %v1585 = vsel %vm1313, %v1330, %v1568
      %v1586 = vsel %vm1314, %v1331, %v1569
      %v1587 = vsel %vm1315, %v1332, %v1570
      %v1588 = vsel %vm1316, %v1333, %v1571
      %v1589 = vsel %vm1317, %v1334, %v1572
      %v1590 = vsel %vm1318, %v1335, %v1573
      %v1591 = vsel %vm1319, %v1336, %v1574
      %v1592 = vmul.f32 %v1575, %v1269
      %v1593 = vmul.f32 %v1576, %v1270
      %v1594 = vmul.f32 %v1577, %v1271
      %v1595 = vmul.f32 %v1578, %v1272
      %v1596 = vmul.f32 %v1579, %v1273
      %v1597 = vmul.f32 %v1580, %v1274
      %v1598 = vmul.f32 %v1581, %v1275
      %v1599 = vmul.f32 %v1582, %v1276
      %v1600 = vmul.f32 %v1583, %v1277
      %v1601 = vmul.f32 %v1584, %v1278
      %v1602 = vmul.f32 %v1585, %v1279
      %v1603 = vmul.f32 %v1586, %v1280
      %v1604 = vmul.f32 %v1587, %v1281
      %v1605 = vmul.f32 %v1588, %v1282
      %v1606 = vmul.f32 %v1589, %v1283
      %v1607 = vmul.f32 %v1590, %v1284
      %v1608 = vmul.f32 %v1591, %v1285
      %v1609 = vadd.f32 %v1233, %v1592
      %v1610 = vadd.f32 %v1234, %v1593
      %v1611 = vadd.f32 %v1235, %v1594
      %v1612 = vadd.f32 %v1236, %v1595
      %v1613 = vadd.f32 %v1237, %v1596
      %v1614 = vadd.f32 %v1238, %v1597
      %v1615 = vadd.f32 %v1239, %v1598
      %v1616 = vadd.f32 %v1240, %v1599
      %v1617 = vadd.f32 %v1241, %v1600
      %v1618 = vadd.f32 %v1242, %v1601
      %v1619 = vadd.f32 %v1243, %v1602
      %v1620 = vadd.f32 %v1244, %v1603
      %v1621 = vadd.f32 %v1245, %v1604
      %v1622 = vadd.f32 %v1246, %v1605
      %v1623 = vadd.f32 %v1247, %v1606
      %v1624 = vadd.f32 %v1248, %v1607
      %v1625 = vadd.f32 %v1249, %v1608
      %v1626 = vmul.f32 %v1575, %v1575
      %v1627 = vmul.f32 %v1576, %v1576
      %v1628 = vmul.f32 %v1577, %v1577
      %v1629 = vmul.f32 %v1578, %v1578
      %v1630 = vmul.f32 %v1579, %v1579
      %v1631 = vmul.f32 %v1580, %v1580
      %v1632 = vmul.f32 %v1581, %v1581
      %v1633 = vmul.f32 %v1582, %v1582
      %v1634 = vmul.f32 %v1583, %v1583
      %v1635 = vmul.f32 %v1584, %v1584
      %v1636 = vmul.f32 %v1585, %v1585
      %v1637 = vmul.f32 %v1586, %v1586
      %v1638 = vmul.f32 %v1587, %v1587
      %v1639 = vmul.f32 %v1588, %v1588
      %v1640 = vmul.f32 %v1589, %v1589
      %v1641 = vmul.f32 %v1590, %v1590
      %v1642 = vmul.f32 %v1591, %v1591
      %v1643 = vrcp.pop %v1626
      %v1644 = vrcp.pop %v1627
      %v1645 = vrcp.pop %v1628
      %v1646 = vrcp.pop %v1629
      %v1647 = vrcp.pop %v1630
      %v1648 = vrcp.pop %v1631
      %v1649 = vrcp.pop %v1632
      %v1650 = vrcp.pop %v1633
      %v1651 = vrcp.pop %v1634
      %v1652 = vrcp.pop %v1635
      %v1653 = vrcp.pop %v1636
      %v1654 = vrcp.pop %v1637
      %v1655 = vrcp.pop %v1638
      %v1656 = vrcp.pop %v1639
      %v1657 = vrcp.pop %v1640
      %v1658 = vrcp.pop %v1641
      %v1659 = vrcp.pop %v1642
      %v1660 = vmul.f32 %v1643, 0.5
      %v1661 = vmul.f32 %v1644, 0.5
      %v1662 = vmul.f32 %v1645, 0.5
      %v1663 = vmul.f32 %v1646, 0.5
      %v1664 = vmul.f32 %v1647, 0.5
      %v1665 = vmul.f32 %v1648, 0.5
      %v1666 = vmul.f32 %v1649, 0.5
      %v1667 = vmul.f32 %v1650, 0.5
      %v1668 = vmul.f32 %v1651, 0.5
      %v1669 = vmul.f32 %v1652, 0.5
      %v1670 = vmul.f32 %v1653, 0.5
      %v1671 = vmul.f32 %v1654, 0.5
      %v1672 = vmul.f32 %v1655, 0.5
      %v1673 = vmul.f32 %v1656, 0.5
      %v1674 = vmul.f32 %v1657, 0.5
      %v1675 = vmul.f32 %v1658, 0.5
      %v1676 = vmul.f32 %v1659, 0.5
      %v1677 = vlog2.pop %v1575
      %v1678 = vmul.f32 %v1677, 0.6931472
      %v1679 = vlog2.pop %v1576
      %v1680 = vmul.f32 %v1679, 0.6931472
      %v1681 = vlog2.pop %v1577
      %v1682 = vmul.f32 %v1681, 0.6931472
      %v1683 = vlog2.pop %v1578
      %v1684 = vmul.f32 %v1683, 0.6931472
      %v1685 = vlog2.pop %v1579
      %v1686 = vmul.f32 %v1685, 0.6931472
      %v1687 = vlog2.pop %v1580
      %v1688 = vmul.f32 %v1687, 0.6931472
      %v1689 = vlog2.pop %v1581
      %v1690 = vmul.f32 %v1689, 0.6931472
      %v1691 = vlog2.pop %v1582
      %v1692 = vmul.f32 %v1691, 0.6931472
      %v1693 = vlog2.pop %v1583
      %v1694 = vmul.f32 %v1693, 0.6931472
      %v1695 = vlog2.pop %v1584
      %v1696 = vmul.f32 %v1695, 0.6931472
      %v1697 = vlog2.pop %v1585
      %v1698 = vmul.f32 %v1697, 0.6931472
      %v1699 = vlog2.pop %v1586
      %v1700 = vmul.f32 %v1699, 0.6931472
      %v1701 = vlog2.pop %v1587
      %v1702 = vmul.f32 %v1701, 0.6931472
      %v1703 = vlog2.pop %v1588
      %v1704 = vmul.f32 %v1703, 0.6931472
      %v1705 = vlog2.pop %v1589
      %v1706 = vmul.f32 %v1705, 0.6931472
      %v1707 = vlog2.pop %v1590
      %v1708 = vmul.f32 %v1707, 0.6931472
      %v1709 = vlog2.pop %v1591
      %v1710 = vmul.f32 %v1709, 0.6931472
      %v1711 = vmul.f32 %v1609, %v1609
      %v1712 = vmul.f32 %v1610, %v1610
      %v1713 = vmul.f32 %v1611, %v1611
      %v1714 = vmul.f32 %v1612, %v1612
      %v1715 = vmul.f32 %v1613, %v1613
      %v1716 = vmul.f32 %v1614, %v1614
      %v1717 = vmul.f32 %v1615, %v1615
      %v1718 = vmul.f32 %v1616, %v1616
      %v1719 = vmul.f32 %v1617, %v1617
      %v1720 = vmul.f32 %v1618, %v1618
      %v1721 = vmul.f32 %v1619, %v1619
      %v1722 = vmul.f32 %v1620, %v1620
      %v1723 = vmul.f32 %v1621, %v1621
      %v1724 = vmul.f32 %v1622, %v1622
      %v1725 = vmul.f32 %v1623, %v1623
      %v1726 = vmul.f32 %v1624, %v1624
      %v1727 = vmul.f32 %v1625, %v1625
      %v1728 = vadd.f32 %v1711, 1.0
      %v1729 = vadd.f32 %v1712, 1.0
      %v1730 = vadd.f32 %v1713, 1.0
      %v1731 = vadd.f32 %v1714, 1.0
      %v1732 = vadd.f32 %v1715, 1.0
      %v1733 = vadd.f32 %v1716, 1.0
      %v1734 = vadd.f32 %v1717, 1.0
      %v1735 = vadd.f32 %v1718, 1.0
      %v1736 = vadd.f32 %v1719, 1.0
      %v1737 = vadd.f32 %v1720, 1.0
      %v1738 = vadd.f32 %v1721, 1.0
      %v1739 = vadd.f32 %v1722, 1.0
      %v1740 = vadd.f32 %v1723, 1.0
      %v1741 = vadd.f32 %v1724, 1.0
      %v1742 = vadd.f32 %v1725, 1.0
      %v1743 = vadd.f32 %v1726, 1.0
      %v1744 = vadd.f32 %v1727, 1.0
      %v1745 = vmul.f32 %v1728, %v1660
      %v1746 = vmul.f32 %v1729, %v1661
      %v1747 = vmul.f32 %v1730, %v1662
      %v1748 = vmul.f32 %v1731, %v1663
      %v1749 = vmul.f32 %v1732, %v1664
      %v1750 = vmul.f32 %v1733, %v1665
      %v1751 = vmul.f32 %v1734, %v1666
      %v1752 = vmul.f32 %v1735, %v1667
      %v1753 = vmul.f32 %v1736, %v1668
      %v1754 = vmul.f32 %v1737, %v1669
      %v1755 = vmul.f32 %v1738, %v1670
      %v1756 = vmul.f32 %v1739, %v1671
      %v1757 = vmul.f32 %v1740, %v1672
      %v1758 = vmul.f32 %v1741, %v1673
      %v1759 = vmul.f32 %v1742, %v1674
      %v1760 = vmul.f32 %v1743, %v1675
      %v1761 = vmul.f32 %v1744, %v1676
      %v1762 = vadd.f32 %v1678, %v1745
      %v1763 = vadd.f32 %v1680, %v1746
      %v1764 = vadd.f32 %v1682, %v1747
      %v1765 = vadd.f32 %v1684, %v1748
      %v1766 = vadd.f32 %v1686, %v1749
      %v1767 = vadd.f32 %v1688, %v1750
      %v1768 = vadd.f32 %v1690, %v1751
      %v1769 = vadd.f32 %v1692, %v1752
      %v1770 = vadd.f32 %v1694, %v1753
      %v1771 = vadd.f32 %v1696, %v1754
      %v1772 = vadd.f32 %v1698, %v1755
      %v1773 = vadd.f32 %v1700, %v1756
      %v1774 = vadd.f32 %v1702, %v1757
      %v1775 = vadd.f32 %v1704, %v1758
      %v1776 = vadd.f32 %v1706, %v1759
      %v1777 = vadd.f32 %v1708, %v1760
      %v1778 = vadd.f32 %v1710, %v1761
      %v1779 = vsub.f32 %v1762, 0.5
      %v1780 = vsub.f32 %v1763, 0.5
      %v1781 = vsub.f32 %v1764, 0.5
      %v1782 = vsub.f32 %v1765, 0.5
      %v1783 = vsub.f32 %v1766, 0.5
      %v1784 = vsub.f32 %v1767, 0.5
      %v1785 = vsub.f32 %v1768, 0.5
      %v1786 = vsub.f32 %v1769, 0.5
      %v1787 = vsub.f32 %v1770, 0.5
      %v1788 = vsub.f32 %v1771, 0.5
      %v1789 = vsub.f32 %v1772, 0.5
      %v1790 = vsub.f32 %v1773, 0.5
      %v1791 = vsub.f32 %v1774, 0.5
      %v1792 = vsub.f32 %v1775, 0.5
      %v1793 = vsub.f32 %v1776, 0.5
      %v1794 = vsub.f32 %v1777, 0.5
      %v1795 = vsub.f32 %v1778, 0.5
      %v1796 = vadd.f32 %v1779, %v1780
      %v1797 = vadd.f32 %v1796, %v1781
      %v1798 = vadd.f32 %v1797, %v1782
      %v1799 = vadd.f32 %v1798, %v1783
      %v1800 = vadd.f32 %v1799, %v1784
      %v1801 = vadd.f32 %v1800, %v1785
      %v1802 = vadd.f32 %v1801, %v1786
      %v1803 = vadd.f32 %v1802, %v1787
      %v1804 = vadd.f32 %v1803, %v1788
      %v1805 = vadd.f32 %v1804, %v1789
      %v1806 = vadd.f32 %v1805, %v1790
      %v1807 = vadd.f32 %v1806, %v1791
      %v1808 = vadd.f32 %v1807, %v1792
      %v1809 = vadd.f32 %v1808, %v1793
      %v1810 = vadd.f32 %v1809, %v1794
      %v1811 = vadd.f32 %v1810, %v1795
      %1812 = vadd.xlane.f32.xlu0 %v1811
      %v1813 = vpop.xlane.xlu0 %1812
      %v1814 = vrot.slane %v1813, 4
      %v1815 = vadd.f32 %v1813, %v1814
      %v1816 = vrot.slane %v1815, 2
      %v1817 = vadd.f32 %v1815, %v1816
      %v1818 = vrot.slane %v1817, 1
      %v1819 = vadd.f32 %v1817, %v1818
      %s1820 = vtos %v1819
      %s1821 = sadd.f32 %s1213, %s1820
      %s1822 = scalar_lea.vmem [#allocation2], 272
      %1823 = vst [vmem:[%s1822] sm:$0xff] %v1609
      %1824 = vst [vmem:[%s1822 + $0x8] sm:$0xff] %v1610
      %1825 = vst [vmem:[%s1822 + $0x10] sm:$0xff] %v1611
      %1826 = vst [vmem:[%s1822 + $0x18] sm:$0xff] %v1612
      %1827 = vst [vmem:[%s1822 + $0x20] sm:$0xff] %v1613
      %1828 = vst [vmem:[%s1822 + $0x28] sm:$0xff] %v1614
      %1829 = vst [vmem:[%s1822 + $0x30] sm:$0xff] %v1615
      %1830 = vst [vmem:[%s1822 + $0x38] sm:$0xff] %v1616
      %1831 = vst [vmem:[%s1822 + $0x40] sm:$0xff] %v1617
      %1832 = vst [vmem:[%s1822 + $0x48] sm:$0xff] %v1618
      %1833 = vst [vmem:[%s1822 + $0x50] sm:$0xff] %v1619
      %1834 = vst [vmem:[%s1822 + $0x58] sm:$0xff] %v1620
      %1835 = vst [vmem:[%s1822 + $0x60] sm:$0xff] %v1621
      %1836 = vst [vmem:[%s1822 + $0x68] sm:$0xff] %v1622
      %1837 = vst [vmem:[%s1822 + $0x70] sm:$0xff] %v1623
      %1838 = vst [vmem:[%s1822 + $0x78] sm:$0xff] %v1624
      %1839 = vst [vmem:[%s1822 + $0x80] sm:$0xff] %v1625
      %s1840 = scalar_lea.smem [#allocation3], 0
      %1841 = sst [smem:[%s1840]] %s1821
    $region13: #{bnn_regressor_forward.1} parent=1 // pred_fallthru
      _
    %v1842 = vld [vmem:[%s0] sm:$0xff]
    %v1843 = vld [vmem:[#allocation2] sm:$0xff]
    %v1844 = vld [vmem:[#allocation2 + $0x8] sm:$0xff]
    %v1845 = vld [vmem:[#allocation2 + $0x10] sm:$0xff]
    %v1846 = vld [vmem:[#allocation2 + $0x18] sm:$0xff]
    %v1847 = vld [vmem:[#allocation2 + $0x20] sm:$0xff]
    %v1848 = vld [vmem:[#allocation2 + $0x28] sm:$0xff]
    %v1849 = vld [vmem:[#allocation2 + $0x30] sm:$0xff]
    %v1850 = vld [vmem:[#allocation2 + $0x38] sm:$0xff]
    %v1851 = vld [vmem:[#allocation2 + $0x40] sm:$0xff]
    %v1852 = vld [vmem:[#allocation2 + $0x48] sm:$0xff]
    %v1853 = vld [vmem:[#allocation2 + $0x50] sm:$0xff]
    %v1854 = vld [vmem:[#allocation2 + $0x58] sm:$0xff]
    %v1855 = vld [vmem:[#allocation2 + $0x60] sm:$0xff]
    %v1856 = vld [vmem:[#allocation2 + $0x68] sm:$0xff]
    %v1857 = vld [vmem:[#allocation2 + $0x70] sm:$0xff]
    %v1858 = vld [vmem:[#allocation2 + $0x78] sm:$0xff]
    %v1859 = vld [vmem:[#allocation2 + $0x80] sm:$0x1]
    %v1860 = vlaneseq
    %v1861 = vshrl.u32 %v1860, 7
    %v1862 = vsub.s32 0, %v1861
    %v1863 = vrot.slane %v1859, %v1862
    %1864 = vmatprep.subr.mxu0 0.0
    %1865 = vmatpush1.msra.mxu0 %v1843
    %1866 = vmatprep.subr.mxu0 0.0
    %1867 = vmatpush1.msra.mxu0 %v1844
    %1868 = vmatprep.subr.mxu0 0.0
    %1869 = vmatpush1.msra.mxu0 %v1845
    %1870 = vmatprep.subr.mxu0 0.0
    %1871 = vmatpush1.msra.mxu0 %v1846
    %1872 = vmatprep.subr.mxu0 0.0
    %1873 = vmatpush1.msra.mxu0 %v1847
    %1874 = vmatprep.subr.mxu0 0.0
    %1875 = vmatpush1.msra.mxu0 %v1848
    %1876 = vmatprep.subr.mxu0 0.0
    %1877 = vmatpush1.msra.mxu0 %v1849
    %1878 = vmatprep.subr.mxu0 0.0
    %1879 = vmatpush1.msra.mxu0 %v1850
    %1880 = vmatprep.subr.mxu0 0.0
    %1881 = vmatpush1.msra.mxu0 %v1851
    %1882 = vmatprep.subr.mxu0 0.0
    %1883 = vmatpush1.msra.mxu0 %v1852
    %1884 = vmatprep.subr.mxu0 0.0
    %1885 = vmatpush1.msra.mxu0 %v1853
    %1886 = vmatprep.subr.mxu0 0.0
    %1887 = vmatpush1.msra.mxu0 %v1854
    %1888 = vmatprep.subr.mxu0 0.0
    %1889 = vmatpush1.msra.mxu0 %v1855
    %1890 = vmatprep.subr.mxu0 0.0
    %1891 = vmatpush1.msra.mxu0 %v1856
    %1892 = vmatprep.subr.mxu0 0.0
    %1893 = vmatpush1.msra.mxu0 %v1857
    %1894 = vmatprep.subr.mxu0 0.0
    %1895 = vmatpush1.msra.mxu0 %v1858
    %1896 = vmatprep.subr.mxu0 0.0
    %1897 = vmatpush1.msra.mxu0 0.0
    %1898 = vmatprep.subr.mxu0 0.0
    %1899 = vmatpush1.msra.mxu0 0.0
    %1900 = vmatprep.subr.mxu0 0.0
    %1901 = vmatpush1.msra.mxu0 0.0
    %1902 = vmatprep.subr.mxu0 0.0
    %1903 = vmatpush1.msra.mxu0 0.0
    %1904 = vmatprep.subr.mxu0 0.0
    %1905 = vmatpush1.msra.mxu0 0.0
    %1906 = vmatprep.subr.mxu0 0.0
    %1907 = vmatpush1.msra.mxu0 0.0
    %1908 = vmatprep.subr.mxu0 0.0
    %1909 = vmatpush1.msra.mxu0 0.0
    %1910 = vmatprep.subr.mxu0 0.0
    %1911 = vmatpush1.msra.mxu0 0.0
    %1912 = vmatprep.subr.mxu0 0.0
    %1913 = vmatpush1.msra.mxu0 0.0
    %1914 = vmatprep.subr.mxu0 0.0
    %1915 = vmatpush1.msra.mxu0 0.0
    %1916 = vmatprep.subr.mxu0 0.0
    %1917 = vmatpush1.msra.mxu0 0.0
    %1918 = vmatprep.subr.mxu0 0.0
    %1919 = vmatpush1.msra.mxu0 0.0
    %1920 = vmatprep.subr.mxu0 0.0
    %1921 = vmatpush1.msra.mxu0 0.0
    %1922 = vmatprep.subr.mxu0 0.0
    %1923 = vmatpush1.msra.mxu0 0.0
    %1924 = vmatprep.subr.mxu0 0.0
    %1925 = vmatpush1.msra.mxu0 0.0
    %1926 = vmatprep.subr.mxu0 0.0
    %1927 = vmatpush1.msra.mxu0 0.0
    %1928 = vmatprep.mubr.f32.mxu0 0.0
    %1929 = vmatmul.mubr.f32.gmra.mrb[0].mxu0 %v1842
    %v1930 = vpop.f32.mrb[0].mxu0
    %v1931 = vadd.f32 %v1863, %v1930
    %v1932 = vpop.f32.mrb[0].mxu0
    %1933 = vdwg.mxu0
    %v1934 = vmax.f32 %v1931, 0.0
    %s1935 = scalar_lea.vmem [#allocation2], 136
    %v1936 = vld [vmem:[%s1935] sm:$0xff]
    %v1937 = vld [vmem:[%s1935 + $0x8] sm:$0xff]
    %v1938 = vld [vmem:[%s1935 + $0x10] sm:$0xff]
    %v1939 = vld [vmem:[%s1935 + $0x18] sm:$0xff]
    %v1940 = vld [vmem:[%s1935 + $0x20] sm:$0xff]
    %v1941 = vld [vmem:[%s1935 + $0x28] sm:$0xff]
    %v1942 = vld [vmem:[%s1935 + $0x30] sm:$0xff]
    %v1943 = vld [vmem:[%s1935 + $0x38] sm:$0xff]
    %v1944 = vld [vmem:[%s1935 + $0x40] sm:$0xff]
    %v1945 = vld [vmem:[%s1935 + $0x48] sm:$0xff]
    %v1946 = vld [vmem:[%s1935 + $0x50] sm:$0xff]
    %v1947 = vld [vmem:[%s1935 + $0x58] sm:$0xff]
    %v1948 = vld [vmem:[%s1935 + $0x60] sm:$0xff]
    %v1949 = vld [vmem:[%s1935 + $0x68] sm:$0xff]
    %v1950 = vld [vmem:[%s1935 + $0x70] sm:$0xff]
    %v1951 = vld [vmem:[%s1935 + $0x78] sm:$0xff]
    %v1952 = vld [vmem:[%s1935 + $0x80] sm:$0x1]
    %v1953 = vlaneseq
    %v1954 = vshrl.u32 %v1953, 7
    %v1955 = vsub.s32 0, %v1954
    %v1956 = vrot.slane %v1952, %v1955
    %1957 = vmatprep.subr.mxu0 0.0
    %1958 = vmatpush1.msra.mxu0 %v1936
    %1959 = vmatprep.subr.mxu0 0.0
    %1960 = vmatpush1.msra.mxu0 %v1937
    %1961 = vmatprep.subr.mxu0 0.0
    %1962 = vmatpush1.msra.mxu0 %v1938
    %1963 = vmatprep.subr.mxu0 0.0
    %1964 = vmatpush1.msra.mxu0 %v1939
    %1965 = vmatprep.subr.mxu0 0.0
    %1966 = vmatpush1.msra.mxu0 %v1940
    %1967 = vmatprep.subr.mxu0 0.0
    %1968 = vmatpush1.msra.mxu0 %v1941
    %1969 = vmatprep.subr.mxu0 0.0
    %1970 = vmatpush1.msra.mxu0 %v1942
    %1971 = vmatprep.subr.mxu0 0.0
    %1972 = vmatpush1.msra.mxu0 %v1943
    %1973 = vmatprep.subr.mxu0 0.0
    %1974 = vmatpush1.msra.mxu0 %v1944
    %1975 = vmatprep.subr.mxu0 0.0
    %1976 = vmatpush1.msra.mxu0 %v1945
    %1977 = vmatprep.subr.mxu0 0.0
    %1978 = vmatpush1.msra.mxu0 %v1946
    %1979 = vmatprep.subr.mxu0 0.0
    %1980 = vmatpush1.msra.mxu0 %v1947
    %1981 = vmatprep.subr.mxu0 0.0
    %1982 = vmatpush1.msra.mxu0 %v1948
    %1983 = vmatprep.subr.mxu0 0.0
    %1984 = vmatpush1.msra.mxu0 %v1949
    %1985 = vmatprep.subr.mxu0 0.0
    %1986 = vmatpush1.msra.mxu0 %v1950
    %1987 = vmatprep.subr.mxu0 0.0
    %1988 = vmatpush1.msra.mxu0 %v1951
    %1989 = vmatprep.subr.mxu0 0.0
    %1990 = vmatpush1.msra.mxu0 0.0
    %1991 = vmatprep.subr.mxu0 0.0
    %1992 = vmatpush1.msra.mxu0 0.0
    %1993 = vmatprep.subr.mxu0 0.0
    %1994 = vmatpush1.msra.mxu0 0.0
    %1995 = vmatprep.subr.mxu0 0.0
    %1996 = vmatpush1.msra.mxu0 0.0
    %1997 = vmatprep.subr.mxu0 0.0
    %1998 = vmatpush1.msra.mxu0 0.0
    %1999 = vmatprep.subr.mxu0 0.0
    %2000 = vmatpush1.msra.mxu0 0.0
    %2001 = vmatprep.subr.mxu0 0.0
    %2002 = vmatpush1.msra.mxu0 0.0
    %2003 = vmatprep.subr.mxu0 0.0
    %2004 = vmatpush1.msra.mxu0 0.0
    %2005 = vmatprep.subr.mxu0 0.0
    %2006 = vmatpush1.msra.mxu0 0.0
    %2007 = vmatprep.subr.mxu0 0.0
    %2008 = vmatpush1.msra.mxu0 0.0
    %2009 = vmatprep.subr.mxu0 0.0
    %2010 = vmatpush1.msra.mxu0 0.0
    %2011 = vmatprep.subr.mxu0 0.0
    %2012 = vmatpush1.msra.mxu0 0.0
    %2013 = vmatprep.subr.mxu0 0.0
    %2014 = vmatpush1.msra.mxu0 0.0
    %2015 = vmatprep.subr.mxu0 0.0
    %2016 = vmatpush1.msra.mxu0 0.0
    %2017 = vmatprep.subr.mxu0 0.0
    %2018 = vmatpush1.msra.mxu0 0.0
    %2019 = vmatprep.subr.mxu0 0.0
    %2020 = vmatpush1.msra.mxu0 0.0
    %2021 = vmatprep.mubr.f32.mxu0 0.0
    %2022 = vmatmul.mubr.f32.gmra.mrb[0].mxu0 %v1934
    %v2023 = vpop.f32.mrb[0].mxu0
    %v2024 = vadd.f32 %v1956, %v2023
    %v2025 = vpop.f32.mrb[0].mxu0
    %2026 = vdwg.mxu0
    %v2027 = vmax.f32 %v2024, 0.0
    %s2028 = scalar_lea.vmem [#allocation2], 272
    %v2029 = vld [vmem:[%s2028] sm:$0xff]
    %v2030 = vld [vmem:[%s2028 + $0x8] sm:$0xff]
    %v2031 = vld [vmem:[%s2028 + $0x10] sm:$0xff]
    %v2032 = vld [vmem:[%s2028 + $0x18] sm:$0xff]
    %v2033 = vld [vmem:[%s2028 + $0x20] sm:$0xff]
    %v2034 = vld [vmem:[%s2028 + $0x28] sm:$0xff]
    %v2035 = vld [vmem:[%s2028 + $0x30] sm:$0xff]
    %v2036 = vld [vmem:[%s2028 + $0x38] sm:$0xff]
    %v2037 = vld [vmem:[%s2028 + $0x40] sm:$0xff]
    %v2038 = vld [vmem:[%s2028 + $0x48] sm:$0xff]
    %v2039 = vld [vmem:[%s2028 + $0x50] sm:$0xff]
    %v2040 = vld [vmem:[%s2028 + $0x58] sm:$0xff]
    %v2041 = vld [vmem:[%s2028 + $0x60] sm:$0xff]
    %v2042 = vld [vmem:[%s2028 + $0x68] sm:$0xff]
    %v2043 = vld [vmem:[%s2028 + $0x70] sm:$0xff]
    %v2044 = vld [vmem:[%s2028 + $0x78] sm:$0xff]
    %v2045 = vld [vmem:[%s2028 + $0x80] sm:$0x1]
    %v2046 = vlaneseq
    %v2047 = vshrl.u32 %v2046, 7
    %v2048 = vsub.s32 0, %v2047
    %v2049 = vrot.slane %v2045, %v2048
    %2050 = vmatprep.subr.mxu0 0.0
    %2051 = vmatpush1.msra.mxu0 %v2029
    %2052 = vmatprep.subr.mxu0 0.0
    %2053 = vmatpush1.msra.mxu0 %v2030
    %2054 = vmatprep.subr.mxu0 0.0
    %2055 = vmatpush1.msra.mxu0 %v2031
    %2056 = vmatprep.subr.mxu0 0.0
    %2057 = vmatpush1.msra.mxu0 %v2032
    %2058 = vmatprep.subr.mxu0 0.0
    %2059 = vmatpush1.msra.mxu0 %v2033
    %2060 = vmatprep.subr.mxu0 0.0
    %2061 = vmatpush1.msra.mxu0 %v2034
    %2062 = vmatprep.subr.mxu0 0.0
    %2063 = vmatpush1.msra.mxu0 %v2035
    %2064 = vmatprep.subr.mxu0 0.0
    %2065 = vmatpush1.msra.mxu0 %v2036
    %2066 = vmatprep.subr.mxu0 0.0
    %2067 = vmatpush1.msra.mxu0 %v2037
    %2068 = vmatprep.subr.mxu0 0.0
    %2069 = vmatpush1.msra.mxu0 %v2038
    %2070 = vmatprep.subr.mxu0 0.0
    %2071 = vmatpush1.msra.mxu0 %v2039
    %2072 = vmatprep.subr.mxu0 0.0
    %2073 = vmatpush1.msra.mxu0 %v2040
    %2074 = vmatprep.subr.mxu0 0.0
    %2075 = vmatpush1.msra.mxu0 %v2041
    %2076 = vmatprep.subr.mxu0 0.0
    %2077 = vmatpush1.msra.mxu0 %v2042
    %2078 = vmatprep.subr.mxu0 0.0
    %2079 = vmatpush1.msra.mxu0 %v2043
    %2080 = vmatprep.subr.mxu0 0.0
    %2081 = vmatpush1.msra.mxu0 %v2044
    %2082 = vmatprep.subr.mxu0 0.0
    %2083 = vmatpush1.msra.mxu0 0.0
    %2084 = vmatprep.subr.mxu0 0.0
    %2085 = vmatpush1.msra.mxu0 0.0
    %2086 = vmatprep.subr.mxu0 0.0
    %2087 = vmatpush1.msra.mxu0 0.0
    %2088 = vmatprep.subr.mxu0 0.0
    %2089 = vmatpush1.msra.mxu0 0.0
    %2090 = vmatprep.subr.mxu0 0.0
    %2091 = vmatpush1.msra.mxu0 0.0
    %2092 = vmatprep.subr.mxu0 0.0
    %2093 = vmatpush1.msra.mxu0 0.0
    %2094 = vmatprep.subr.mxu0 0.0
    %2095 = vmatpush1.msra.mxu0 0.0
    %2096 = vmatprep.subr.mxu0 0.0
    %2097 = vmatpush1.msra.mxu0 0.0
    %2098 = vmatprep.subr.mxu0 0.0
    %2099 = vmatpush1.msra.mxu0 0.0
    %2100 = vmatprep.subr.mxu0 0.0
    %2101 = vmatpush1.msra.mxu0 0.0
    %2102 = vmatprep.subr.mxu0 0.0
    %2103 = vmatpush1.msra.mxu0 0.0
    %2104 = vmatprep.subr.mxu0 0.0
    %2105 = vmatpush1.msra.mxu0 0.0
    %2106 = vmatprep.subr.mxu0 0.0
    %2107 = vmatpush1.msra.mxu0 0.0
    %2108 = vmatprep.subr.mxu0 0.0
    %2109 = vmatpush1.msra.mxu0 0.0
    %2110 = vmatprep.subr.mxu0 0.0
    %2111 = vmatpush1.msra.mxu0 0.0
    %2112 = vmatprep.subr.mxu0 0.0
    %2113 = vmatpush1.msra.mxu0 0.0
    %2114 = vmatprep.mubr.f32.mxu0 0.0
    %2115 = vmatmul.mubr.f32.gmra.mrb[0].mxu0 %v2027
    %v2116 = vpop.f32.mrb[0].mxu0
    %v2117 = vadd.f32 %v2049, %v2116
    %v2118 = vpop.f32.mrb[0].mxu0
    %2119 = vdwg.mxu0
    %2120 = vst [vmem:[%s2] sm:$0xff] %v2117
    // Predicated region
    $region14: #{bnn_regressor_forward.1} parent=1 // pred_check
      _
    $region15: #{bnn_regressor_forward.1} parent=1 // pred_check_branch
      %2122 = sbr.rel (0) target = $region17
    $region16: #{bnn_regressor_forward.1} parent=1 // pred_region
      _
    $region17: #{bnn_regressor_forward.1} parent=1 // pred_fallthru
      _
    // Predicated region
    $region18: #{bnn_regressor_forward.1} parent=1 // pred_check
      _
    $region19: #{bnn_regressor_forward.1} parent=1 // pred_check_branch
      %2124 = sbr.rel (0) target = $region21
    $region20: #{bnn_regressor_forward.1} parent=1 // pred_region
      %s2126 = ssub.s32 16, 16
      %2127 = vsyncadd [#allocation4], %s2126
      %2130 = dma.smem_to_hbm [#allocation3], 16, %s3, [#allocation4]
    $region21: #{bnn_regressor_forward.1} parent=1 // pred_fallthru
      _
    // Predicated region
    $region22: #{bnn_regressor_forward.1} parent=1 // pred_check
      _
    $region23: #{bnn_regressor_forward.1} parent=1 // pred_check_branch
      %2132 = sbr.rel (0) target = $region25
    $region24: #{bnn_regressor_forward.1} parent=1 // pred_region
      _
    $region25: #{bnn_regressor_forward.1} parent=1 // pred_fallthru
      _
    // Predicated region
    $region26: #{bnn_regressor_forward.1} parent=1 // pred_check
      _
    $region27: #{bnn_regressor_forward.1} parent=1 // pred_check_branch
      %2134 = sbr.rel (0) target = $region29
    $region28: #{bnn_regressor_forward.1} parent=1 // pred_region
      %2135 = dma.done [#allocation4], 16
    $region29: #{bnn_regressor_forward.1} parent=1 // pred_fallthru
      _
    %2136 = sfence
    %2137 = vsyncpa [#allocation4], 1

</llo_original>
